<compile_context>
chip_gen: v7x
topology: tpu7x:2x2x1
jax: 0.10.0
libtpu: 0.0.40
codegen_flags: <defaults>
</compile_context>

<pallas_src>
import functools
import jax
import jax.numpy as jnp
import numpy as np
from jax.experimental import pallas as pl
from jax.experimental.pallas import tpu as pltpu


def _round_up(x, m):
    return ((x + m - 1) // m) * m


def _make_kernel(D1, hidden_layers):
    L = hidden_layers

    def kernel(coords_ref, coeffs_ref, gamma_ref, beta_ref,
               w_ref, b_ref, wlin_ref, blin_ref, out_ref):
        # Everything is feature-major: features on sublanes, samples on lanes.
        # --- ChebyKAN: Chebyshev basis on tanh(coords), one MXU contraction ---
        t = jnp.tanh(coords_ref[...].astype(jnp.float32))        # (in, TN)
        Ts = [jnp.ones_like(t)]
        if D1 > 1:
            Ts.append(t)
        for _ in range(2, D1):
            Ts.append(2.0 * t * Ts[-1] - Ts[-2])
        # Degree-major sublane concat -> (D1*in, TN); matches coeffs flattening.
        basis = jnp.concatenate(Ts[:D1], axis=0)
        acc = jnp.dot(coeffs_ref[...], basis,
                      preferred_element_type=jnp.float32)        # (H, TN)

        # --- LayerNorm over hidden_features (biased variance, eps=1e-5) ---
        mean = jnp.mean(acc, axis=0, keepdims=True)              # (1, TN)
        var = jnp.mean((acc - mean) ** 2, axis=0, keepdims=True)
        x = (acc - mean) * jax.lax.rsqrt(var + 1e-5)
        x = x * gamma_ref[...] + beta_ref[...]                   # (H, TN)

        # --- LowRankReLU layers: y = relu(W_full^T @ (x*y) + b) ---
        # W_full = Wl @ Wr is precomputed (transposed) once in the wrapper.
        y = x
        for l in range(L):
            z = x * y
            y = jnp.dot(w_ref[l], z, preferred_element_type=jnp.float32) + b_ref[l]
            y = jnp.maximum(y, 0.0)

        # --- outermost linear (feature-major, sublane-padded to out_sub) ---
        out = jnp.dot(wlin_ref[...], x * y,
                      preferred_element_type=jnp.float32) + blin_ref[...]
        out_ref[...] = out.astype(out_ref.dtype)

    return kernel


def sl2a_forward(coords, params, *, in_features, deg, hidden_features,
                 hidden_layers, out_features, rank, tile_n=512):
    del rank  # low-rank factors are fused in the wrapper
    x = coords.reshape(-1, in_features)          # mirrors coords.squeeze()
    n = x.shape[0]
    D1 = deg + 1
    H = hidden_features
    L = hidden_layers

    n_pad = _round_up(n, tile_n)                 # pad samples to a tile multiple
    out_sub = _round_up(out_features, 8)         # sublane-pad the tiny head dim

    # Feature-major coords: (in, n_pad); padded columns are zeros (finite
    # through tanh / LayerNorm-with-eps) and sliced off below.
    x_t = x.T
    if n_pad != n:
        x_t = jnp.concatenate(
            [x_t, jnp.zeros((in_features, n_pad - n), x_t.dtype)], axis=1)

    # Transposed / fused parameters (all cheap, done once per call).
    coeffs_t = params["coeffs_flat"].T                              # (H, D1*in)
    gamma_t = params["gamma"].T                                     # (H, 1)
    beta_t = params["beta"].T                                       # (H, 1)
    w_full_t = jnp.einsum('lhr,lrk->lkh', params["wl"], params["wr"])  # (L,H,H) = (Wl@Wr)^T
    b_t = jnp.transpose(params["b"], (0, 2, 1))                     # (L, H, 1)
    wlin_pad = jnp.zeros((out_sub, H), jnp.float32)
    wlin_pad = wlin_pad.at[:out_features].set(params["wlin_t"].T)   # (out_sub, H)
    blin_pad = jnp.zeros((out_sub, 1), jnp.float32)
    blin_pad = blin_pad.at[:out_features, 0].set(params["blin"][0]) # (out_sub, 1)

    kernel = _make_kernel(D1, L)

    grid_spec = pltpu.PrefetchScalarGridSpec(
        num_scalar_prefetch=0,
        grid=(n_pad // tile_n,),
        in_specs=[
            pl.BlockSpec((in_features, tile_n), lambda i: (0, i)),
            pl.BlockSpec((H, D1 * in_features), lambda i: (0, 0)),
            pl.BlockSpec((H, 1), lambda i: (0, 0)),
            pl.BlockSpec((H, 1), lambda i: (0, 0)),
            pl.BlockSpec((L, H, H), lambda i: (0, 0, 0)),
            pl.BlockSpec((L, H, 1), lambda i: (0, 0, 0)),
            pl.BlockSpec((out_sub, H), lambda i: (0, 0)),
            pl.BlockSpec((out_sub, 1), lambda i: (0, 0)),
        ],
        out_specs=pl.BlockSpec((out_sub, tile_n), lambda i: (0, i)),
    )

    out_t = pl.pallas_call(
        kernel,
        out_shape=jax.ShapeDtypeStruct((out_sub, n_pad), jnp.float32),
        grid_spec=grid_spec,
        # No vmem_limit_bytes: defaults are ample (working set << 1 MiB) and
        # safe on v7x's 64 MiB physical VMEM.
        compiler_params=pltpu.CompilerParams(
            dimension_semantics=("parallel",),
        ),
    )(x_t, coeffs_t, gamma_t, beta_t, w_full_t, b_t, wlin_pad, blin_pad)

    # Feature-major output: slice the few useful sublane rows, transpose back.
    return out_t[:out_features, :n].T


def ref_forward(coords, params, *, in_features, deg, hidden_layers):
    """Pure-JAX reference mirroring the PyTorch forward (row-major)."""
    x0 = coords.reshape(-1, in_features)
    t = jnp.tanh(x0)
    D1 = deg + 1
    Ts = [jnp.ones_like(t)]
    if D1 > 1:
        Ts.append(t)
    for _ in range(2, D1):
        Ts.append(2.0 * t * Ts[-1] - Ts[-2])
    basis = jnp.concatenate(Ts[:D1], axis=-1)                 # (N, D1*in)
    acc = basis @ params["coeffs_flat"]
    mean = acc.mean(-1, keepdims=True)
    var = ((acc - mean) ** 2).mean(-1, keepdims=True)
    x = (acc - mean) / jnp.sqrt(var + 1e-5)
    x = x * params["gamma"] + params["beta"]
    y = x
    for l in range(hidden_layers):
        w_full = params["wl"][l] @ params["wr"][l]
        y = jnp.maximum((x * y) @ w_full + params["b"][l, 0], 0.0)
    return (x * y) @ params["wlin_t"] + params["blin"]


def init_params(key, *, in_features, deg, hidden_features, hidden_layers,
                out_features, rank):
    D1 = deg + 1
    H = hidden_features
    ks = jax.random.split(key, 8)
    # ChebyKAN coefficients (in, out, D1), normal std = 1/(in*(deg+1)); stored
    # flattened as (D1*in, H) degree-major so the kernel can sublane-concat the
    # per-degree Chebyshev terms and do one matmul.
    coeffs = jax.random.normal(ks[0], (in_features, H, D1), jnp.float32) \
        * (1.0 / (in_features * D1))
    coeffs_flat = jnp.transpose(coeffs, (2, 0, 1)).reshape(D1 * in_features, H)
    # LayerNorm affine
    gamma = jnp.ones((1, H), jnp.float32)
    beta = jnp.zeros((1, H), jnp.float32)
    # LowRank layers: kaiming_uniform(a=sqrt(5)) => bound = 1/sqrt(fan_in)
    wl = jax.random.uniform(ks[1], (hidden_layers, H, rank), jnp.float32,
                            -1.0 / np.sqrt(rank), 1.0 / np.sqrt(rank))
    wr = jax.random.uniform(ks[2], (hidden_layers, rank, H), jnp.float32,
                            -1.0 / np.sqrt(H), 1.0 / np.sqrt(H))
    b = jax.random.uniform(ks[3], (hidden_layers, 1, H), jnp.float32,
                           -1.0 / np.sqrt(rank), 1.0 / np.sqrt(rank))
    # Final nn.Linear(H, out): torch weight (out, H); stored transposed (H, out)
    wlin_t = jax.random.uniform(ks[4], (H, out_features), jnp.float32,
                                -1.0 / np.sqrt(H), 1.0 / np.sqrt(H))
    blin = jax.random.uniform(ks[5], (1, out_features), jnp.float32,
                              -1.0 / np.sqrt(H), 1.0 / np.sqrt(H))
    return dict(coeffs_flat=coeffs_flat, gamma=gamma, beta=beta,
                wl=wl, wr=wr, b=b, wlin_t=wlin_t, blin=blin)


if __name__ == "__main__":
    # Small, SL2A-consistent shapes: coordinate-MLP style inputs.
    in_features, hidden_features, hidden_layers, out_features = 2, 32, 2, 3
    deg, rank = 8, 32
    N = 1000           # not a tile multiple: exercises the padding path
    tile_n = 512       # grid = 2 (even => both v7x TCs busy; ~free on v5e/v6e)

    key = jax.random.PRNGKey(0)
    k_in, k_par = jax.random.split(key)
    coords = jax.random.uniform(k_in, (1, N, in_features), jnp.float32,
                                -1.0, 1.0)
    params = init_params(k_par, in_features=in_features, deg=deg,
                         hidden_features=hidden_features,
                         hidden_layers=hidden_layers,
                         out_features=out_features, rank=rank)

    fwd = functools.partial(sl2a_forward, in_features=in_features, deg=deg,
                            hidden_features=hidden_features,
                            hidden_layers=hidden_layers,
                            out_features=out_features, rank=rank,
                            tile_n=tile_n)
    out = jax.block_until_ready(fwd(coords, params))

    ref = jax.block_until_ready(
        ref_forward(coords, params, in_features=in_features, deg=deg,
                    hidden_layers=hidden_layers))
    assert out.shape == (N, out_features)
    np.testing.assert_allclose(np.asarray(out), np.asarray(ref),
                               rtol=1e-4, atol=1e-4)
    print("KERNEL_OK")
</pallas_src>

<mosaic_0001>
module attributes {stable_mosaic.version = 11 : i64} {
  func.func @kernel(%arg0: i32, %arg1: memref<2x512xf32, #tpu.memory_space<vmem>>, %arg2: memref<32x18xf32, #tpu.memory_space<vmem>>, %arg3: memref<32x1xf32, #tpu.memory_space<vmem>>, %arg4: memref<32x1xf32, #tpu.memory_space<vmem>>, %arg5: memref<2x32x32xf32, #tpu.memory_space<vmem>>, %arg6: memref<2x32x1xf32, #tpu.memory_space<vmem>>, %arg7: memref<8x32xf32, #tpu.memory_space<vmem>>, %arg8: memref<8x1xf32, #tpu.memory_space<vmem>>, %arg9: memref<8x512xf32, #tpu.memory_space<vmem>>) attributes {dimension_semantics = [#tpu.dimension_semantics<parallel>], iteration_bounds = array<i64: 2>, scalar_prefetch = 0 : i64, scratch_operands = 0 : i64, tpu.core_type = #tpu.core_type<tc>, window_params = [{transform_indices = @transform_0, window_bounds = array<i64: 2, 512>}, {pipeline_mode = #tpu.pipeline_mode<synchronous>, transform_indices = @transform_1, window_bounds = array<i64: 32, 18>}, {pipeline_mode = #tpu.pipeline_mode<synchronous>, transform_indices = @transform_2, window_bounds = array<i64: 32, 1>}, {pipeline_mode = #tpu.pipeline_mode<synchronous>, transform_indices = @transform_3, window_bounds = array<i64: 32, 1>}, {pipeline_mode = #tpu.pipeline_mode<synchronous>, transform_indices = @transform_4, window_bounds = array<i64: 2, 32, 32>}, {pipeline_mode = #tpu.pipeline_mode<synchronous>, transform_indices = @transform_5, window_bounds = array<i64: 2, 32, 1>}, {pipeline_mode = #tpu.pipeline_mode<synchronous>, transform_indices = @transform_6, window_bounds = array<i64: 8, 32>}, {pipeline_mode = #tpu.pipeline_mode<synchronous>, transform_indices = @transform_7, window_bounds = array<i64: 8, 1>}, {transform_indices = @transform_8, window_bounds = array<i64: 8, 512>}]} {
    %c0 = arith.constant 0 : index
    %c0_0 = arith.constant 0 : index
    %0 = vector.load %arg1[%c0, %c0_0] : memref<2x512xf32, #tpu.memory_space<vmem>>, vector<2x512xf32>
    %1 = math.tanh %0 : vector<2x512xf32>
    %cst = arith.constant 1.000000e+00 : f32
    %2 = vector.broadcast %cst : f32 to vector<2x512xf32>
    %cst_1 = arith.constant 2.000000e+00 : f32
    %3 = vector.broadcast %cst_1 : f32 to vector<2x512xf32>
    %4 = arith.mulf %3, %1 : vector<2x512xf32>
    %5 = arith.mulf %4, %1 : vector<2x512xf32>
    %6 = arith.subf %5, %2 : vector<2x512xf32>
    %cst_2 = arith.constant 2.000000e+00 : f32
    %7 = vector.broadcast %cst_2 : f32 to vector<2x512xf32>
    %8 = arith.mulf %7, %1 : vector<2x512xf32>
    %9 = arith.mulf %8, %6 : vector<2x512xf32>
    %10 = arith.subf %9, %1 : vector<2x512xf32>
    %cst_3 = arith.constant 2.000000e+00 : f32
    %11 = vector.broadcast %cst_3 : f32 to vector<2x512xf32>
    %12 = arith.mulf %11, %1 : vector<2x512xf32>
    %13 = arith.mulf %12, %10 : vector<2x512xf32>
    %14 = arith.subf %13, %6 : vector<2x512xf32>
    %cst_4 = arith.constant 2.000000e+00 : f32
    %15 = vector.broadcast %cst_4 : f32 to vector<2x512xf32>
    %16 = arith.mulf %15, %1 : vector<2x512xf32>
    %17 = arith.mulf %16, %14 : vector<2x512xf32>
    %18 = arith.subf %17, %10 : vector<2x512xf32>
    %cst_5 = arith.constant 2.000000e+00 : f32
    %19 = vector.broadcast %cst_5 : f32 to vector<2x512xf32>
    %20 = arith.mulf %19, %1 : vector<2x512xf32>
    %21 = arith.mulf %20, %18 : vector<2x512xf32>
    %22 = arith.subf %21, %14 : vector<2x512xf32>
    %cst_6 = arith.constant 2.000000e+00 : f32
    %23 = vector.broadcast %cst_6 : f32 to vector<2x512xf32>
    %24 = arith.mulf %23, %1 : vector<2x512xf32>
    %25 = arith.mulf %24, %22 : vector<2x512xf32>
    %26 = arith.subf %25, %18 : vector<2x512xf32>
    %cst_7 = arith.constant 2.000000e+00 : f32
    %27 = vector.broadcast %cst_7 : f32 to vector<2x512xf32>
    %28 = arith.mulf %27, %1 : vector<2x512xf32>
    %29 = arith.mulf %28, %26 : vector<2x512xf32>
    %30 = arith.subf %29, %22 : vector<2x512xf32>
    %31 = tpu.concatenate %2, %1, %6, %10, %14, %18, %22, %26, %30 in 0 : vector<2x512xf32>, vector<2x512xf32>, vector<2x512xf32>, vector<2x512xf32>, vector<2x512xf32>, vector<2x512xf32>, vector<2x512xf32>, vector<2x512xf32>, vector<2x512xf32> -> vector<18x512xf32>
    %c0_8 = arith.constant 0 : index
    %c0_9 = arith.constant 0 : index
    %32 = vector.load %arg2[%c0_8, %c0_9] : memref<32x18xf32, #tpu.memory_space<vmem>>, vector<32x18xf32>
    %cst_10 = arith.constant dense<0.000000e+00> : vector<32x512xf32>
    %33 = tpu.matmul %32, %31, %cst_10 {dimension_numbers = #tpu.dot_dimension_numbers<[1], [0], [0], [1], [0, 0, 1, 1], [], []>} : vector<32x18xf32>, vector<18x512xf32>, vector<32x512xf32> -> vector<32x512xf32>
    %cst_11 = arith.constant dense<0.000000e+00> : vector<512xf32>
    %34 = vector.multi_reduction <add>, %33, %cst_11 [0] : vector<32x512xf32> to vector<512xf32>
    %35 = vector.shape_cast %34 : vector<512xf32> to vector<1x512xf32>
    %cst_12 = arith.constant 3.200000e+01 : f32
    %36 = vector.broadcast %cst_12 : f32 to vector<1x512xf32>
    %37 = arith.divf %35, %36 : vector<1x512xf32>
    %38 = vector.broadcast %37 : vector<1x512xf32> to vector<32x512xf32>
    %39 = arith.subf %33, %38 : vector<32x512xf32>
    %40 = arith.mulf %39, %39 : vector<32x512xf32>
    %cst_13 = arith.constant dense<0.000000e+00> : vector<512xf32>
    %41 = vector.multi_reduction <add>, %40, %cst_13 [0] : vector<32x512xf32> to vector<512xf32>
    %42 = vector.shape_cast %41 : vector<512xf32> to vector<1x512xf32>
    %cst_14 = arith.constant 3.200000e+01 : f32
    %43 = vector.broadcast %cst_14 : f32 to vector<1x512xf32>
    %44 = arith.divf %42, %43 : vector<1x512xf32>
    %45 = vector.broadcast %37 : vector<1x512xf32> to vector<32x512xf32>
    %46 = arith.subf %33, %45 : vector<32x512xf32>
    %cst_15 = arith.constant 9.99999974E-6 : f32
    %47 = vector.broadcast %cst_15 : f32 to vector<1x512xf32>
    %48 = arith.addf %44, %47 : vector<1x512xf32>
    %49 = math.rsqrt %48 : vector<1x512xf32>
    %50 = vector.broadcast %49 : vector<1x512xf32> to vector<32x512xf32>
    %51 = arith.mulf %46, %50 : vector<32x512xf32>
    %c0_16 = arith.constant 0 : index
    %c0_17 = arith.constant 0 : index
    %52 = vector.load %arg3[%c0_16, %c0_17] : memref<32x1xf32, #tpu.memory_space<vmem>>, vector<32x1xf32>
    %53 = vector.broadcast %52 : vector<32x1xf32> to vector<32x512xf32>
    %54 = arith.mulf %51, %53 : vector<32x512xf32>
    %c0_18 = arith.constant 0 : index
    %c0_19 = arith.constant 0 : index
    %55 = vector.load %arg4[%c0_18, %c0_19] : memref<32x1xf32, #tpu.memory_space<vmem>>, vector<32x1xf32>
    %56 = vector.broadcast %55 : vector<32x1xf32> to vector<32x512xf32>
    %57 = arith.addf %54, %56 : vector<32x512xf32>
    %58 = arith.mulf %57, %57 : vector<32x512xf32>
    %c0_20 = arith.constant 0 : index
    %c0_21 = arith.constant 0 : index
    %c0_22 = arith.constant 0 : index
    %59 = vector.load %arg5[%c0_20, %c0_21, %c0_22] : memref<2x32x32xf32, #tpu.memory_space<vmem>>, vector<1x32x32xf32>
    %60 = vector.shape_cast %59 : vector<1x32x32xf32> to vector<32x32xf32>
    %cst_23 = arith.constant dense<0.000000e+00> : vector<32x512xf32>
    %61 = tpu.matmul %60, %58, %cst_23 {dimension_numbers = #tpu.dot_dimension_numbers<[1], [0], [0], [1], [0, 0, 1, 1], [], []>} : vector<32x32xf32>, vector<32x512xf32>, vector<32x512xf32> -> vector<32x512xf32>
    %c0_24 = arith.constant 0 : index
    %c0_25 = arith.constant 0 : index
    %c0_26 = arith.constant 0 : index
    %62 = vector.load %arg6[%c0_24, %c0_25, %c0_26] : memref<2x32x1xf32, #tpu.memory_space<vmem>>, vector<1x32x1xf32>
    %63 = vector.shape_cast %62 : vector<1x32x1xf32> to vector<32x1xf32>
    %64 = vector.broadcast %63 : vector<32x1xf32> to vector<32x512xf32>
    %65 = arith.addf %61, %64 : vector<32x512xf32>
    %cst_27 = arith.constant 0.000000e+00 : f32
    %66 = vector.broadcast %cst_27 : f32 to vector<32x512xf32>
    %67 = arith.maximumf %65, %66 : vector<32x512xf32>
    %68 = arith.mulf %57, %67 : vector<32x512xf32>
    %c1 = arith.constant 1 : index
    %c0_28 = arith.constant 0 : index
    %c0_29 = arith.constant 0 : index
    %69 = vector.load %arg5[%c1, %c0_28, %c0_29] : memref<2x32x32xf32, #tpu.memory_space<vmem>>, vector<1x32x32xf32>
    %70 = vector.shape_cast %69 : vector<1x32x32xf32> to vector<32x32xf32>
    %cst_30 = arith.constant dense<0.000000e+00> : vector<32x512xf32>
    %71 = tpu.matmul %70, %68, %cst_30 {dimension_numbers = #tpu.dot_dimension_numbers<[1], [0], [0], [1], [0, 0, 1, 1], [], []>} : vector<32x32xf32>, vector<32x512xf32>, vector<32x512xf32> -> vector<32x512xf32>
    %c1_31 = arith.constant 1 : index
    %c0_32 = arith.constant 0 : index
    %c0_33 = arith.constant 0 : index
    %72 = vector.load %arg6[%c1_31, %c0_32, %c0_33] : memref<2x32x1xf32, #tpu.memory_space<vmem>>, vector<1x32x1xf32>
    %73 = vector.shape_cast %72 : vector<1x32x1xf32> to vector<32x1xf32>
    %74 = vector.broadcast %73 : vector<32x1xf32> to vector<32x512xf32>
    %75 = arith.addf %71, %74 : vector<32x512xf32>
    %cst_34 = arith.constant 0.000000e+00 : f32
    %76 = vector.broadcast %cst_34 : f32 to vector<32x512xf32>
    %77 = arith.maximumf %75, %76 : vector<32x512xf32>
    %c0_35 = arith.constant 0 : index
    %c0_36 = arith.constant 0 : index
    %78 = vector.load %arg7[%c0_35, %c0_36] : memref<8x32xf32, #tpu.memory_space<vmem>>, vector<8x32xf32>
    %79 = arith.mulf %57, %77 : vector<32x512xf32>
    %cst_37 = arith.constant dense<0.000000e+00> : vector<8x512xf32>
    %80 = tpu.matmul %78, %79, %cst_37 {dimension_numbers = #tpu.dot_dimension_numbers<[1], [0], [0], [1], [0, 0, 1, 1], [], []>} : vector<8x32xf32>, vector<32x512xf32>, vector<8x512xf32> -> vector<8x512xf32>
    %c0_38 = arith.constant 0 : index
    %c0_39 = arith.constant 0 : index
    %81 = vector.load %arg8[%c0_38, %c0_39] : memref<8x1xf32, #tpu.memory_space<vmem>>, vector<8x1xf32>
    %82 = vector.broadcast %81 : vector<8x1xf32> to vector<8x512xf32>
    %83 = arith.addf %80, %82 : vector<8x512xf32>
    %c0_40 = arith.constant 0 : index
    %c0_41 = arith.constant 0 : index
    %84 = vector.load %arg9[%c0_40, %c0_41] : memref<8x512xf32, #tpu.memory_space<vmem>>, vector<8x512xf32>
    tpu.vector_store %arg9[%c0_40, %c0_41], %83 {strides = array<i32>} : memref<8x512xf32, #tpu.memory_space<vmem>>, vector<8x512xf32>,
    return
  }
  func.func @transform_0(%arg0: i32) -> (i32, i32) {
    %c0_i32 = arith.constant 0 : i32
    %c0_i32_0 = arith.constant 0 : i32
    return %c0_i32, %arg0 : i32, i32
  }
  func.func @transform_1(%arg0: i32) -> (i32, i32) {
    %c0_i32 = arith.constant 0 : i32
    %c0_i32_0 = arith.constant 0 : i32
    %c0_i32_1 = arith.constant 0 : i32
    return %c0_i32, %c0_i32_0 : i32, i32
  }
  func.func @transform_2(%arg0: i32) -> (i32, i32) {
    %c0_i32 = arith.constant 0 : i32
    %c0_i32_0 = arith.constant 0 : i32
    %c0_i32_1 = arith.constant 0 : i32
    return %c0_i32, %c0_i32_0 : i32, i32
  }
  func.func @transform_3(%arg0: i32) -> (i32, i32) {
    %c0_i32 = arith.constant 0 : i32
    %c0_i32_0 = arith.constant 0 : i32
    %c0_i32_1 = arith.constant 0 : i32
    return %c0_i32, %c0_i32_0 : i32, i32
  }
  func.func @transform_4(%arg0: i32) -> (i32, i32, i32) {
    %c0_i32 = arith.constant 0 : i32
    %c0_i32_0 = arith.constant 0 : i32
    %c0_i32_1 = arith.constant 0 : i32
    %c0_i32_2 = arith.constant 0 : i32
    return %c0_i32, %c0_i32_0, %c0_i32_1 : i32, i32, i32
  }
  func.func @transform_5(%arg0: i32) -> (i32, i32, i32) {
    %c0_i32 = arith.constant 0 : i32
    %c0_i32_0 = arith.constant 0 : i32
    %c0_i32_1 = arith.constant 0 : i32
    %c0_i32_2 = arith.constant 0 : i32
    return %c0_i32, %c0_i32_0, %c0_i32_1 : i32, i32, i32
  }
  func.func @transform_6(%arg0: i32) -> (i32, i32) {
    %c0_i32 = arith.constant 0 : i32
    %c0_i32_0 = arith.constant 0 : i32
    %c0_i32_1 = arith.constant 0 : i32
    return %c0_i32, %c0_i32_0 : i32, i32
  }
  func.func @transform_7(%arg0: i32) -> (i32, i32) {
    %c0_i32 = arith.constant 0 : i32
    %c0_i32_0 = arith.constant 0 : i32
    %c0_i32_1 = arith.constant 0 : i32
    return %c0_i32, %c0_i32_0 : i32, i32
  }
  func.func @transform_8(%arg0: i32) -> (i32, i32) {
    %c0_i32 = arith.constant 0 : i32
    %c0_i32_0 = arith.constant 0 : i32
    return %c0_i32, %arg0 : i32, i32
  }
}

</mosaic_0001>

<llo_original>
// kernel: tpu_custom_call.1
$region0: #{tpu_custom_call.1}
  #allocation0 [shape = 'u32[]', space=smem, size = 0x4, offset = 0x4, fixed_abs, tag = 'smem constant byte address 0x4 - core index']
  #allocation1 [shape = 'u32[144,128]{1,0:T(1,128)}', space=vmem, size = 0x12000, scoped, tag = 'internal scratch']
  %s0 = inlined_call_operand.vmem [shape: f32[2,1024], index: 0, kind: input, shape index: {}]
  %s1 = inlined_call_operand.vmem [shape: f32[32,18], index: 1, kind: input, shape index: {}]
  %s2 = inlined_call_operand.vmem [shape: f32[32,1], index: 2, kind: input, shape index: {}]
  %s3 = inlined_call_operand.vmem [shape: f32[32,1], index: 3, kind: input, shape index: {}]
  %s4 = inlined_call_operand.vmem [shape: f32[2,32,32], index: 4, kind: input, shape index: {}]
  %s5 = inlined_call_operand.vmem [shape: f32[2,32,1], index: 5, kind: input, shape index: {}]
  %s6 = inlined_call_operand.vmem [shape: f32[8,32], index: 6, kind: input, shape index: {}]
  %s7 = inlined_call_operand.vmem [shape: f32[8,1], index: 7, kind: input, shape index: {}]
  %s8 = inlined_call_operand.hbm [shape: f32[8,1024], index: 8, kind: output, shape index: {}]
  %s9 = sld [smem:[#allocation0]]
  $region65: #{tpu_custom_call.1} parent=0
    _
  %s11 = ssub.s32 1, %s9
  %s12 = scalar_select 0, %s11, %s9
  $region1: #{tpu_custom_call.1} parent=0
    #allocation2 [shape = 'u8[32768]{0}', space=vmem, size = 0x8000, scoped, tag = 'output window, operand 0']
    #allocation3 [shape = 's32[2]{0}', space=sflag, size = 0x8, scoped, tag = 'scoped memory for tpu_custom_call.1']
    %13 = vsyncpa [#allocation3], 0
    %s14 = scalar_lea.sflag [#allocation3], 1
    %15 = vsyncpa %s14, 0
    loop: start=0, step=1, limit=4
    $region2: #{tpu_custom_call.1} parent=1 // loop_pre_header
      _
    $region3: #{tpu_custom_call.1} parent=1 // loop_header
      %s17 = sphi 0, %s21
      %p18 = scmp.ge.s32.totalorder %s17, 4
      %s27 = sphi 0, %s29
      %s30 = sphi 0, %s27
      %s31 = sphi 0, %s30
      %s47 = sphi 0, %s31
      %s51 = sphi 0, %s51
      %s53 = sphi 0, %s51
      %s54 = sphi 0, %s53
      %s68 = sphi 0, %s54
      %s72 = sphi 0, %s72
      %s74 = sphi 0, %s72
      %s75 = sphi 0, %s74
      %s89 = sphi 0, %s75
      %s93 = sphi 0, %s93
      %s95 = sphi 0, %s93
      %s96 = sphi 0, %s95
      %s110 = sphi 0, %s96
      %s114 = sphi 0, %s114
      %s116 = sphi 0, %s114
      %s117 = sphi 0, %s116
      %s131 = sphi 0, %s117
      %s135 = sphi 0, %s135
      %s137 = sphi 0, %s135
      %s138 = sphi 0, %s137
      %s152 = sphi 0, %s138
      %s156 = sphi 0, %s156
      %s158 = sphi 0, %s156
      %s159 = sphi 0, %s158
      %s173 = sphi 0, %s159
      %s177 = sphi 0, %s177
      %s179 = sphi 0, %s177
      %s180 = sphi 0, %s179
      %s194 = sphi 0, %s180
      %s200 = sphi 0, %s202
      %s203 = sphi 0, %s200
      %s204 = sphi 0, %s203
      %s220 = sphi 0, %s204
    $region4: #{tpu_custom_call.1} parent=1 // loop_header_branch
      %20 = sbr.rel (%p18) target = $region8
    $region5: #{tpu_custom_call.1} parent=1 // loop_body
      %s22 = ssub.s32 %s17, 1
      %s23 = ssub.s32 %s17, 2
      %s24 = sadd.s32 %s17, 1
      %s25 = ssub.s32 %s17, %s24
      %p26 = scmp.eq.s32.totalorder %s25, 0
      %s28 = sadd.s32 %s27, 1
      %s29 = scalar_select %p26, %s27, %s28
      %p32 = pneg %p26
      %p33 = scmp.eq.s32.totalorder %s17, 1
      %p34 = por %p32, %p33
      %p35 = scmp.ne.s32.totalorder %s27, %s30
      %p36 = scmp.eq.s32.totalorder %s17, 0
      %p37 = por %p35, %p36
      %p38 = scmp.ne.s32.totalorder %s27, %s30
      %p39 = scmp.eq.s32.totalorder %s22, 1
      %p40 = por %p38, %p39
      %p41 = scmp.ne.s32.totalorder %s30, %s31
      %p42 = scmp.eq.s32.totalorder %s22, 0
      %p43 = por %p41, %p42
      %p44 = scmp.ne.s32.totalorder %s30, %s31
      %p45 = scmp.eq.s32.totalorder %s23, 1
      %p46 = por %p44, %p45
      %p48 = scmp.ne.s32.totalorder %s31, %s47
      %p49 = scmp.eq.s32.totalorder %s23, 0
      %p50 = por %p48, %p49
      %s52 = sadd.s32 %s51, 1
      %p55 = scmp.eq.s32.totalorder %s17, 1
      %p56 = scmp.ne.s32.totalorder %s51, %s53
      %p57 = scmp.eq.s32.totalorder %s17, 0
      %p58 = por %p56, %p57
      %p59 = scmp.ne.s32.totalorder %s51, %s53
      %p60 = scmp.eq.s32.totalorder %s22, 1
      %p61 = por %p59, %p60
      %p62 = scmp.ne.s32.totalorder %s53, %s54
      %p63 = scmp.eq.s32.totalorder %s22, 0
      %p64 = por %p62, %p63
      %p65 = scmp.ne.s32.totalorder %s53, %s54
      %p66 = scmp.eq.s32.totalorder %s23, 1
      %p67 = por %p65, %p66
      %p69 = scmp.ne.s32.totalorder %s54, %s68
      %p70 = scmp.eq.s32.totalorder %s23, 0
      %p71 = por %p69, %p70
      %s73 = sadd.s32 %s72, 1
      %p76 = scmp.eq.s32.totalorder %s17, 1
      %p77 = scmp.ne.s32.totalorder %s72, %s74
      %p78 = scmp.eq.s32.totalorder %s17, 0
      %p79 = por %p77, %p78
      %p80 = scmp.ne.s32.totalorder %s72, %s74
      %p81 = scmp.eq.s32.totalorder %s22, 1
      %p82 = por %p80, %p81
      %p83 = scmp.ne.s32.totalorder %s74, %s75
      %p84 = scmp.eq.s32.totalorder %s22, 0
      %p85 = por %p83, %p84
      %p86 = scmp.ne.s32.totalorder %s74, %s75
      %p87 = scmp.eq.s32.totalorder %s23, 1
      %p88 = por %p86, %p87
      %p90 = scmp.ne.s32.totalorder %s75, %s89
      %p91 = scmp.eq.s32.totalorder %s23, 0
      %p92 = por %p90, %p91
      %s94 = sadd.s32 %s93, 1
      %p97 = scmp.eq.s32.totalorder %s17, 1
      %p98 = scmp.ne.s32.totalorder %s93, %s95
      %p99 = scmp.eq.s32.totalorder %s17, 0
      %p100 = por %p98, %p99
      %p101 = scmp.ne.s32.totalorder %s93, %s95
      %p102 = scmp.eq.s32.totalorder %s22, 1
      %p103 = por %p101, %p102
      %p104 = scmp.ne.s32.totalorder %s95, %s96
      %p105 = scmp.eq.s32.totalorder %s22, 0
      %p106 = por %p104, %p105
      %p107 = scmp.ne.s32.totalorder %s95, %s96
      %p108 = scmp.eq.s32.totalorder %s23, 1
      %p109 = por %p107, %p108
      %p111 = scmp.ne.s32.totalorder %s96, %s110
      %p112 = scmp.eq.s32.totalorder %s23, 0
      %p113 = por %p111, %p112
      %s115 = sadd.s32 %s114, 1
      %p118 = scmp.eq.s32.totalorder %s17, 1
      %p119 = scmp.ne.s32.totalorder %s114, %s116
      %p120 = scmp.eq.s32.totalorder %s17, 0
      %p121 = por %p119, %p120
      %p122 = scmp.ne.s32.totalorder %s114, %s116
      %p123 = scmp.eq.s32.totalorder %s22, 1
      %p124 = por %p122, %p123
      %p125 = scmp.ne.s32.totalorder %s116, %s117
      %p126 = scmp.eq.s32.totalorder %s22, 0
      %p127 = por %p125, %p126
      %p128 = scmp.ne.s32.totalorder %s116, %s117
      %p129 = scmp.eq.s32.totalorder %s23, 1
      %p130 = por %p128, %p129
      %p132 = scmp.ne.s32.totalorder %s117, %s131
      %p133 = scmp.eq.s32.totalorder %s23, 0
      %p134 = por %p132, %p133
      %s136 = sadd.s32 %s135, 1
      %p139 = scmp.eq.s32.totalorder %s17, 1
      %p140 = scmp.ne.s32.totalorder %s135, %s137
      %p141 = scmp.eq.s32.totalorder %s17, 0
      %p142 = por %p140, %p141
      %p143 = scmp.ne.s32.totalorder %s135, %s137
      %p144 = scmp.eq.s32.totalorder %s22, 1
      %p145 = por %p143, %p144
      %p146 = scmp.ne.s32.totalorder %s137, %s138
      %p147 = scmp.eq.s32.totalorder %s22, 0
      %p148 = por %p146, %p147
      %p149 = scmp.ne.s32.totalorder %s137, %s138
      %p150 = scmp.eq.s32.totalorder %s23, 1
      %p151 = por %p149, %p150
      %p153 = scmp.ne.s32.totalorder %s138, %s152
      %p154 = scmp.eq.s32.totalorder %s23, 0
      %p155 = por %p153, %p154
      %s157 = sadd.s32 %s156, 1
      %p160 = scmp.eq.s32.totalorder %s17, 1
      %p161 = scmp.ne.s32.totalorder %s156, %s158
      %p162 = scmp.eq.s32.totalorder %s17, 0
      %p163 = por %p161, %p162
      %p164 = scmp.ne.s32.totalorder %s156, %s158
      %p165 = scmp.eq.s32.totalorder %s22, 1
      %p166 = por %p164, %p165
      %p167 = scmp.ne.s32.totalorder %s158, %s159
      %p168 = scmp.eq.s32.totalorder %s22, 0
      %p169 = por %p167, %p168
      %p170 = scmp.ne.s32.totalorder %s158, %s159
      %p171 = scmp.eq.s32.totalorder %s23, 1
      %p172 = por %p170, %p171
      %p174 = scmp.ne.s32.totalorder %s159, %s173
      %p175 = scmp.eq.s32.totalorder %s23, 0
      %p176 = por %p174, %p175
      %s178 = sadd.s32 %s177, 1
      %p181 = scmp.eq.s32.totalorder %s17, 1
      %p182 = scmp.ne.s32.totalorder %s177, %s179
      %p183 = scmp.eq.s32.totalorder %s17, 0
      %p184 = por %p182, %p183
      %p185 = scmp.ne.s32.totalorder %s177, %s179
      %p186 = scmp.eq.s32.totalorder %s22, 1
      %p187 = por %p185, %p186
      %p188 = scmp.ne.s32.totalorder %s179, %s180
      %p189 = scmp.eq.s32.totalorder %s22, 0
      %p190 = por %p188, %p189
      %p191 = scmp.ne.s32.totalorder %s179, %s180
      %p192 = scmp.eq.s32.totalorder %s23, 1
      %p193 = por %p191, %p192
      %p195 = scmp.ne.s32.totalorder %s180, %s194
      %p196 = scmp.eq.s32.totalorder %s23, 0
      %p197 = por %p195, %p196
      %s198 = ssub.s32 %s17, %s24
      %p199 = scmp.eq.s32.totalorder %s198, 0
      %s201 = sadd.s32 %s200, 1
      %s202 = scalar_select %p199, %s200, %s201
      %p205 = pneg %p199
      %p206 = scmp.eq.s32.totalorder %s17, 1
      %p207 = por %p205, %p206
      %p208 = scmp.ne.s32.totalorder %s200, %s203
      %p209 = scmp.eq.s32.totalorder %s17, 0
      %p210 = por %p208, %p209
      %p211 = scmp.ne.s32.totalorder %s200, %s203
      %p212 = scmp.eq.s32.totalorder %s22, 1
      %p213 = por %p211, %p212
      %p214 = scmp.ne.s32.totalorder %s203, %s204
      %p215 = scmp.eq.s32.totalorder %s22, 0
      %p216 = por %p214, %p215
      %p217 = scmp.ne.s32.totalorder %s203, %s204
      %p218 = scmp.eq.s32.totalorder %s23, 1
      %p219 = por %p217, %p218
      %p221 = scmp.ne.s32.totalorder %s204, %s220
      %p222 = scmp.eq.s32.totalorder %s23, 0
      %p223 = por %p221, %p222
      %p224 = scmp.le.s32.totalorder 1, %s17
      %p225 = scmp.lt.s32.totalorder %s17, 3
      %p226 = pnand %p224, %p225
      %p227 = pneg %p226
      // Predicated region
      $region9: #{tpu_custom_call.1} parent=5 // pred_check
        _
      $region10: #{tpu_custom_call.1} parent=5 // pred_check_branch
        %229 = sbr.rel (%p226) target = $region12
      $region11: #{tpu_custom_call.1} parent=5 // pred_region
        %s230 = ssub.s32 %s17, 1
        // Predicated region
        $region13: #{tpu_custom_call.1} parent=11 // pred_check
          %p231 = pneg %p64
        $region14: #{tpu_custom_call.1} parent=11 // pred_check_branch
          %233 = sbr.rel (%p231) target = $region16
        $region15: #{tpu_custom_call.1} parent=11 // pred_region
          _
        $region16: #{tpu_custom_call.1} parent=11 // pred_fallthru
          _
        // Predicated region
        $region17: #{tpu_custom_call.1} parent=11 // pred_check
          %p234 = pneg %p85
        $region18: #{tpu_custom_call.1} parent=11 // pred_check_branch
          %236 = sbr.rel (%p234) target = $region20
        $region19: #{tpu_custom_call.1} parent=11 // pred_region
          _
        $region20: #{tpu_custom_call.1} parent=11 // pred_fallthru
          _
        // Predicated region
        $region21: #{tpu_custom_call.1} parent=11 // pred_check
          %p237 = pneg %p106
        $region22: #{tpu_custom_call.1} parent=11 // pred_check_branch
          %239 = sbr.rel (%p237) target = $region24
        $region23: #{tpu_custom_call.1} parent=11 // pred_region
          _
        $region24: #{tpu_custom_call.1} parent=11 // pred_fallthru
          _
        // Predicated region
        $region25: #{tpu_custom_call.1} parent=11 // pred_check
          %p240 = pneg %p127
        $region26: #{tpu_custom_call.1} parent=11 // pred_check_branch
          %242 = sbr.rel (%p240) target = $region28
        $region27: #{tpu_custom_call.1} parent=11 // pred_region
          _
        $region28: #{tpu_custom_call.1} parent=11 // pred_fallthru
          _
        // Predicated region
        $region29: #{tpu_custom_call.1} parent=11 // pred_check
          %p243 = pneg %p148
        $region30: #{tpu_custom_call.1} parent=11 // pred_check_branch
          %245 = sbr.rel (%p243) target = $region32
        $region31: #{tpu_custom_call.1} parent=11 // pred_region
          _
        $region32: #{tpu_custom_call.1} parent=11 // pred_fallthru
          _
        // Predicated region
        $region33: #{tpu_custom_call.1} parent=11 // pred_check
          %p246 = pneg %p169
        $region34: #{tpu_custom_call.1} parent=11 // pred_check_branch
          %248 = sbr.rel (%p246) target = $region36
        $region35: #{tpu_custom_call.1} parent=11 // pred_region
          _
        $region36: #{tpu_custom_call.1} parent=11 // pred_fallthru
          _
        // Predicated region
        $region37: #{tpu_custom_call.1} parent=11 // pred_check
          %p249 = pneg %p190
        $region38: #{tpu_custom_call.1} parent=11 // pred_check_branch
          %251 = sbr.rel (%p249) target = $region40
        $region39: #{tpu_custom_call.1} parent=11 // pred_region
          _
        $region40: #{tpu_custom_call.1} parent=11 // pred_fallthru
          _
      $region12: #{tpu_custom_call.1} parent=5 // pred_fallthru
        _
      %p252 = scmp.lt.s32.totalorder %s17, 2
      // Predicated region
      $region41: #{tpu_custom_call.1} parent=5 // pred_check
        %p253 = pneg %p252
      $region42: #{tpu_custom_call.1} parent=5 // pred_check_branch
        %255 = sbr.rel (%p253) target = $region44
      $region43: #{tpu_custom_call.1} parent=5 // pred_region
        // Predicated region
        $region45: #{tpu_custom_call.1} parent=43 // pred_check
          %p256 = pneg %p37
        $region46: #{tpu_custom_call.1} parent=43 // pred_check_branch
          %258 = sbr.rel (%p256) target = $region48
        $region47: #{tpu_custom_call.1} parent=43 // pred_region
          %s259 = smul.u32 4, %s17
          %p260 = scmp.lt.s32.totalorder %s259, 7
          %s261 = scalar_select %p260, %s259, 7
          %s262 = smul.addr %s261, 2
          %s263 = scalar_lea.vmem %s0, %s262
          %s264 = smul.u32 4, %s17
        $region48: #{tpu_custom_call.1} parent=43 // pred_fallthru
          _
      $region44: #{tpu_custom_call.1} parent=5 // pred_fallthru
        _
      %p265 = scmp.le.s32.totalorder 1, %s17
      %p266 = scmp.lt.s32.totalorder %s17, 3
      %p267 = pnand %p265, %p266
      %p268 = pneg %p267
      // Predicated region
      $region49: #{tpu_custom_call.1} parent=5 // pred_check
        _
      $region50: #{tpu_custom_call.1} parent=5 // pred_check_branch
        %270 = sbr.rel (%p267) target = $region52
      $region51: #{tpu_custom_call.1} parent=5 // pred_region
        %s271 = ssub.s32 %s17, 1
        %s272 = smul.u32 4, %s22
        %p273 = scmp.lt.s32.totalorder %s272, 7
        %s274 = scalar_select %p273, %s272, 7
        %s275 = smul.addr %s274, 2
        %s276 = scalar_lea.vmem %s0, %s275
        %p277 = pneg %p43
        %p278 = pneg %p40
        %p279 = pneg %p64
        %p280 = pneg %p61
        %p281 = pneg %p85
        %p282 = pneg %p82
        %p283 = pneg %p106
        %p284 = pneg %p103
        %p285 = pneg %p127
        %p286 = pneg %p124
        %p287 = pneg %p148
        %p288 = pneg %p145
        %p289 = pneg %p169
        %p290 = pneg %p166
        %p291 = pneg %p190
        %p292 = pneg %p187
        %p293 = pneg %p216
        %p294 = pneg %p213
        %s295 = sand.u32 %s203, 1
        %s296 = scalar_lea.sflag [#allocation3], %s295
        %s297 = sand.u32 %s203, 1
        %s298 = smul.addr %s297, 32
        %s299 = scalar_lea.vmem [#allocation2], %s298
        %s300 = smul.u32 4, %s22
        %p301 = scmp.lt.s32.totalorder %s300, 7
        %s302 = scalar_select %p301, %s300, 7
        %s303 = smul.addr %s302, 2
        %s304 = scalar_lea.vmem %s0, %s303
        %s305 = smul.u32 4, %s22
        %s306 = smul.u32 4, %s22
        %v307 = vld [vmem:[%s304] sm:$0xff]
        %v308 = vtanh.pop %v307
        %v309 = vmul.f32 %v308, 2.0
        %v310 = vmul.f32 %v309, %v308
        %v311 = vsub.f32 %v310, 1.0
        %v312 = vmul.f32 %v309, %v311
        %v313 = vsub.f32 %v312, %v308
        %v314 = vmul.f32 %v309, %v313
        %v315 = vsub.f32 %v314, %v311
        %v316 = vmul.f32 %v309, %v315
        %v317 = vsub.f32 %v316, %v313
        %v318 = vmul.f32 %v309, %v317
        %v319 = vsub.f32 %v318, %v315
        %v320 = vmul.f32 %v309, %v319
        %v321 = vsub.f32 %v320, %v317
        %v322 = vmul.f32 %v309, %v321
        %v323 = vsub.f32 %v322, %v319
        %v325 = vcombine.low %v308, %v308
        %v327 = vunpack.c.l.s4 1983009808
        %v328 = vunpack.c.0.s8 %v327
        %v329 = vlaneseq
        %v330 = vshrl.u32 %v329, 7
        %v331 = vsub.s32 %v328, %v330
        %v332 = vrot.slane %v325, %v331
        %v334 = vunpack.c.l.s4 1983009808
        %v335 = vunpack.c.0.s8 %v334
        %v336 = vlaneseq
        %v337 = vshrl.u32 %v336, 7
        %v338 = vsub.s32 %v335, %v337
        %v339 = vrot.slane %v308, %v338
        %v340 = vcombine.high %v332, %v332
        %v341 = vcombine.high %v339, %v339
        %v347 = vcombine.high %v311, %v311
        %v349 = vunpack.c.l.s4 1983009808
        %v350 = vunpack.c.0.s8 %v349
        %v351 = vlaneseq
        %v352 = vshrl.u32 %v351, 7
        %v353 = vsub.s32 %v350, %v352
        %v354 = vrot.slane %v311, %v353
        %v356 = vunpack.c.l.s4 1983009808
        %v357 = vunpack.c.0.s8 %v356
        %v358 = vlaneseq
        %v359 = vshrl.u32 %v358, 7
        %v360 = vsub.s32 %v357, %v359
        %v361 = vrot.slane %v347, %v360
        %v362 = vcombine.low %v354, %v354
        %v363 = vcombine.low %v361, %v361
        %v369 = vcombine.low %v313, %v313
        %v371 = vunpack.c.l.s4 1983009808
        %v372 = vunpack.c.0.s8 %v371
        %v373 = vlaneseq
        %v374 = vshrl.u32 %v373, 7
        %v375 = vsub.s32 %v372, %v374
        %v376 = vrot.slane %v369, %v375
        %v378 = vunpack.c.l.s4 1983009808
        %v379 = vunpack.c.0.s8 %v378
        %v380 = vlaneseq
        %v381 = vshrl.u32 %v380, 7
        %v382 = vsub.s32 %v379, %v381
        %v383 = vrot.slane %v313, %v382
        %v384 = vcombine.low %v376, %v376
        %v385 = vcombine.low %v383, %v383
        %v391 = vcombine.high %v315, %v315
        %v393 = vunpack.c.l.s4 1983009808
        %v394 = vunpack.c.0.s8 %v393
        %v395 = vlaneseq
        %v396 = vshrl.u32 %v395, 7
        %v397 = vsub.s32 %v394, %v396
        %v398 = vrot.slane %v315, %v397
        %v400 = vunpack.c.l.s4 1983009808
        %v401 = vunpack.c.0.s8 %v400
        %v402 = vlaneseq
        %v403 = vshrl.u32 %v402, 7
        %v404 = vsub.s32 %v401, %v403
        %v405 = vrot.slane %v391, %v404
        %v406 = vcombine.high %v398, %v398
        %v407 = vcombine.high %v405, %v405
        %v413 = vcombine.low %v317, %v317
        %v415 = vunpack.c.l.s4 1983009808
        %v416 = vunpack.c.0.s8 %v415
        %v417 = vlaneseq
        %v418 = vshrl.u32 %v417, 7
        %v419 = vsub.s32 %v416, %v418
        %v420 = vrot.slane %v413, %v419
        %v422 = vunpack.c.l.s4 1983009808
        %v423 = vunpack.c.0.s8 %v422
        %v424 = vlaneseq
        %v425 = vshrl.u32 %v424, 7
        %v426 = vsub.s32 %v423, %v425
        %v427 = vrot.slane %v317, %v426
        %v428 = vcombine.high %v420, %v420
        %v429 = vcombine.high %v427, %v427
        %v435 = vcombine.high %v319, %v319
        %v437 = vunpack.c.l.s4 1983009808
        %v438 = vunpack.c.0.s8 %v437
        %v439 = vlaneseq
        %v440 = vshrl.u32 %v439, 7
        %v441 = vsub.s32 %v438, %v440
        %v442 = vrot.slane %v319, %v441
        %v444 = vunpack.c.l.s4 1983009808
        %v445 = vunpack.c.0.s8 %v444
        %v446 = vlaneseq
        %v447 = vshrl.u32 %v446, 7
        %v448 = vsub.s32 %v445, %v447
        %v449 = vrot.slane %v435, %v448
        %v450 = vcombine.low %v442, %v442
        %v451 = vcombine.low %v449, %v449
        %v457 = vcombine.low %v321, %v321
        %v459 = vunpack.c.l.s4 1983009808
        %v460 = vunpack.c.0.s8 %v459
        %v461 = vlaneseq
        %v462 = vshrl.u32 %v461, 7
        %v463 = vsub.s32 %v460, %v462
        %v464 = vrot.slane %v457, %v463
        %v466 = vunpack.c.l.s4 1983009808
        %v467 = vunpack.c.0.s8 %v466
        %v468 = vlaneseq
        %v469 = vshrl.u32 %v468, 7
        %v470 = vsub.s32 %v467, %v469
        %v471 = vrot.slane %v321, %v470
        %v472 = vcombine.low %v464, %v464
        %v473 = vcombine.low %v471, %v471
        %v479 = vcombine.high %v323, %v323
        %v481 = vunpack.c.l.s4 1983009808
        %v482 = vunpack.c.0.s8 %v481
        %v483 = vlaneseq
        %v484 = vshrl.u32 %v483, 7
        %v485 = vsub.s32 %v482, %v484
        %v486 = vrot.slane %v323, %v485
        %v488 = vunpack.c.l.s4 1983009808
        %v489 = vunpack.c.0.s8 %v488
        %v490 = vlaneseq
        %v491 = vshrl.u32 %v490, 7
        %v492 = vsub.s32 %v489, %v491
        %v493 = vrot.slane %v479, %v492
        %v494 = vcombine.high %v486, %v486
        %v495 = vcombine.high %v493, %v493
        %vm496 = vcmask 1041408
        %v497 = vsel %vm496, 1.0, %v332
        %v498 = vsel %vm496, 1.0, %v340
        %v499 = vsel %vm496, 1.0, %v339
        %v500 = vsel %vm496, 1.0, %v341
        %vm501 = vcmask 1043456
        %v502 = vsel %vm501, %v497, %v362
        %v503 = vsel %vm501, %v498, %v354
        %v504 = vsel %vm501, %v499, %v363
        %v505 = vsel %vm501, %v500, %v361
        %vm506 = vcmask 1045504
        %v507 = vsel %vm506, %v502, %v384
        %v508 = vsel %vm506, %v503, %v376
        %v509 = vsel %vm506, %v504, %v385
        %v510 = vsel %vm506, %v505, %v383
        %v511 = vsel %vm496, %v398, %v420
        %v512 = vsel %vm496, %v406, %v428
        %v513 = vsel %vm496, %v405, %v427
        %v514 = vsel %vm496, %v407, %v429
        %v515 = vsel %vm501, %v511, %v450
        %v516 = vsel %vm501, %v512, %v442
        %v517 = vsel %vm501, %v513, %v451
        %v518 = vsel %vm501, %v514, %v449
        %v519 = vsel %vm506, %v515, %v472
        %v520 = vsel %vm506, %v516, %v464
        %v521 = vsel %vm506, %v517, %v473
        %v522 = vsel %vm506, %v518, %v471
        %v523 = vld [vmem:[%s1] sm:$0xff]
        %v524 = vld [vmem:[%s1 + $0x8] sm:$0xff]
        %v525 = vld [vmem:[%s1 + $0x10] sm:$0xff]
        %v526 = vld [vmem:[%s1 + $0x18] sm:$0xff]
        %vm527 = vcmask 146432
        %v529 = vsel %vm527, %v523, 0
        %v532 = vsel %vm527, %v524, 0
        %v535 = vsel %vm527, %v525, 0
        %v538 = vsel %vm527, %v526, 0
        %v540 = vsel %vm496, %v486, 0
        %v542 = vsel %vm496, %v494, 0
        %v544 = vsel %vm496, %v493, 0
        %v546 = vsel %vm496, %v495, 0
        %548 = vmatprep.subr.mxu0 %v508
        %549 = vmatpush1.msra.mxu0 %v507
        %550 = vmatprep.subr.mxu0 %v520
        %551 = vmatpush1.msra.mxu0 %v519
        %552 = vmatprep.subr.mxu0 %v542
        %553 = vmatpush1.msra.mxu0 %v540
        %554 = vmatprep.subr.mxu0 0.0
        %555 = vmatpush1.msra.mxu0 0.0
        %556 = vmatprep.subr.mxu0 0.0
        %557 = vmatpush1.msra.mxu0 0.0
        %558 = vmatprep.subr.mxu0 0.0
        %559 = vmatpush1.msra.mxu0 0.0
        %560 = vmatprep.subr.mxu0 0.0
        %561 = vmatpush1.msra.mxu0 0.0
        %562 = vmatprep.subr.mxu0 0.0
        %563 = vmatpush1.msra.mxu0 0.0
        %564 = vmatprep.subr.mxu0 0.0
        %565 = vmatpush1.msra.mxu0 0.0
        %566 = vmatprep.subr.mxu0 0.0
        %567 = vmatpush1.msra.mxu0 0.0
        %568 = vmatprep.subr.mxu0 0.0
        %569 = vmatpush1.msra.mxu0 0.0
        %570 = vmatprep.subr.mxu0 0.0
        %571 = vmatpush1.msra.mxu0 0.0
        %572 = vmatprep.subr.mxu0 0.0
        %573 = vmatpush1.msra.mxu0 0.0
        %574 = vmatprep.subr.mxu0 0.0
        %575 = vmatpush1.msra.mxu0 0.0
        %576 = vmatprep.subr.mxu0 0.0
        %577 = vmatpush1.msra.mxu0 0.0
        %578 = vmatprep.subr.mxu0 0.0
        %579 = vmatpush1.msra.mxu0 0.0
        %580 = vmatprep.subr.mxu0 0.0
        %581 = vmatpush1.msra.mxu0 0.0
        %582 = vmatprep.subr.mxu0 0.0
        %583 = vmatpush1.msra.mxu0 0.0
        %584 = vmatprep.subr.mxu0 0.0
        %585 = vmatpush1.msra.mxu0 0.0
        %586 = vmatprep.subr.mxu0 0.0
        %587 = vmatpush1.msra.mxu0 0.0
        %588 = vmatprep.subr.mxu0 0.0
        %589 = vmatpush1.msra.mxu0 0.0
        %590 = vmatprep.subr.mxu0 0.0
        %591 = vmatpush1.msra.mxu0 0.0
        %592 = vmatprep.subr.mxu0 0.0
        %593 = vmatpush1.msra.mxu0 0.0
        %594 = vmatprep.subr.mxu0 0.0
        %595 = vmatpush1.msra.mxu0 0.0
        %596 = vmatprep.subr.mxu0 0.0
        %597 = vmatpush1.msra.mxu0 0.0
        %598 = vmatprep.subr.mxu0 0.0
        %599 = vmatpush1.msra.mxu0 0.0
        %600 = vmatprep.subr.mxu0 0.0
        %601 = vmatpush1.msra.mxu0 0.0
        %602 = vmatprep.subr.mxu0 0.0
        %603 = vmatpush1.msra.mxu0 0.0
        %604 = vmatprep.subr.mxu0 0.0
        %605 = vmatpush1.msra.mxu0 0.0
        %606 = vmatprep.subr.mxu0 0.0
        %607 = vmatpush1.msra.mxu0 0.0
        %608 = vmatprep.subr.mxu0 0.0
        %609 = vmatpush1.msra.mxu0 0.0
        %610 = vmatprep.subr.mxu0 0.0
        %611 = vmatpush1.msra.mxu0 0.0
        %612 = vmatprep.mubr.f32.mxu0 0.0
        %613 = vmatmul.mubr.f32.gmra.mrb[0].mxu0 %v529
        %v614 = vpop.f32.mrb[0].mxu0
        %v615 = vadd.f32 0.0, %v614
        %v616 = vpop.f32.mrb[0].mxu0
        %v617 = vadd.f32 0.0, %v616
        %618 = vmatprep.mubr.f32.mxu0 0.0
        %619 = vmatmul.mubr.f32.gmra.mrb[0].mxu0 %v532
        %v620 = vpop.f32.mrb[0].mxu0
        %v621 = vadd.f32 0.0, %v620
        %v622 = vpop.f32.mrb[0].mxu0
        %v623 = vadd.f32 0.0, %v622
        %624 = vmatprep.mubr.f32.mxu0 0.0
        %625 = vmatmul.mubr.f32.gmra.mrb[0].mxu0 %v535
        %v626 = vpop.f32.mrb[0].mxu0
        %v627 = vadd.f32 0.0, %v626
        %v628 = vpop.f32.mrb[0].mxu0
        %v629 = vadd.f32 0.0, %v628
        %630 = vmatprep.mubr.f32.mxu0 0.0
        %631 = vmatmul.mubr.f32.gmra.mrb[0].mxu0 %v538
        %v632 = vpop.f32.mrb[0].mxu0
        %v633 = vadd.f32 0.0, %v632
        %v634 = vpop.f32.mrb[0].mxu0
        %v635 = vadd.f32 0.0, %v634
        %636 = vdwg.mxu0
        %637 = vmatprep.subr.mxu0 %v510
        %638 = vmatpush1.msra.mxu0 %v509
        %639 = vmatprep.subr.mxu0 %v522
        %640 = vmatpush1.msra.mxu0 %v521
        %641 = vmatprep.subr.mxu0 %v546
        %642 = vmatpush1.msra.mxu0 %v544
        %643 = vmatprep.subr.mxu0 0.0
        %644 = vmatpush1.msra.mxu0 0.0
        %645 = vmatprep.subr.mxu0 0.0
        %646 = vmatpush1.msra.mxu0 0.0
        %647 = vmatprep.subr.mxu0 0.0
        %648 = vmatpush1.msra.mxu0 0.0
        %649 = vmatprep.subr.mxu0 0.0
        %650 = vmatpush1.msra.mxu0 0.0
        %651 = vmatprep.subr.mxu0 0.0
        %652 = vmatpush1.msra.mxu0 0.0
        %653 = vmatprep.subr.mxu0 0.0
        %654 = vmatpush1.msra.mxu0 0.0
        %655 = vmatprep.subr.mxu0 0.0
        %656 = vmatpush1.msra.mxu0 0.0
        %657 = vmatprep.subr.mxu0 0.0
        %658 = vmatpush1.msra.mxu0 0.0
        %659 = vmatprep.subr.mxu0 0.0
        %660 = vmatpush1.msra.mxu0 0.0
        %661 = vmatprep.subr.mxu0 0.0
        %662 = vmatpush1.msra.mxu0 0.0
        %663 = vmatprep.subr.mxu0 0.0
        %664 = vmatpush1.msra.mxu0 0.0
        %665 = vmatprep.subr.mxu0 0.0
        %666 = vmatpush1.msra.mxu0 0.0
        %667 = vmatprep.subr.mxu0 0.0
        %668 = vmatpush1.msra.mxu0 0.0
        %669 = vmatprep.subr.mxu0 0.0
        %670 = vmatpush1.msra.mxu0 0.0
        %671 = vmatprep.subr.mxu0 0.0
        %672 = vmatpush1.msra.mxu0 0.0
        %673 = vmatprep.subr.mxu0 0.0
        %674 = vmatpush1.msra.mxu0 0.0
        %675 = vmatprep.subr.mxu0 0.0
        %676 = vmatpush1.msra.mxu0 0.0
        %677 = vmatprep.subr.mxu0 0.0
        %678 = vmatpush1.msra.mxu0 0.0
        %679 = vmatprep.subr.mxu0 0.0
        %680 = vmatpush1.msra.mxu0 0.0
        %681 = vmatprep.subr.mxu0 0.0
        %682 = vmatpush1.msra.mxu0 0.0
        %683 = vmatprep.subr.mxu0 0.0
        %684 = vmatpush1.msra.mxu0 0.0
        %685 = vmatprep.subr.mxu0 0.0
        %686 = vmatpush1.msra.mxu0 0.0
        %687 = vmatprep.subr.mxu0 0.0
        %688 = vmatpush1.msra.mxu0 0.0
        %689 = vmatprep.subr.mxu0 0.0
        %690 = vmatpush1.msra.mxu0 0.0
        %691 = vmatprep.subr.mxu0 0.0
        %692 = vmatpush1.msra.mxu0 0.0
        %693 = vmatprep.subr.mxu0 0.0
        %694 = vmatpush1.msra.mxu0 0.0
        %695 = vmatprep.subr.mxu0 0.0
        %696 = vmatpush1.msra.mxu0 0.0
        %697 = vmatprep.subr.mxu0 0.0
        %698 = vmatpush1.msra.mxu0 0.0
        %699 = vmatprep.subr.mxu0 0.0
        %700 = vmatpush1.msra.mxu0 0.0
        %701 = vmatprep.mubr.f32.mxu0 0.0
        %702 = vmatmul.mubr.f32.gmra.mrb[0].mxu0 %v529
        %v703 = vpop.f32.mrb[0].mxu0
        %v704 = vadd.f32 0.0, %v703
        %v705 = vpop.f32.mrb[0].mxu0
        %v706 = vadd.f32 0.0, %v705
        %707 = vmatprep.mubr.f32.mxu0 0.0
        %708 = vmatmul.mubr.f32.gmra.mrb[0].mxu0 %v532
        %v709 = vpop.f32.mrb[0].mxu0
        %v710 = vadd.f32 0.0, %v709
        %v711 = vpop.f32.mrb[0].mxu0
        %v712 = vadd.f32 0.0, %v711
        %713 = vmatprep.mubr.f32.mxu0 0.0
        %714 = vmatmul.mubr.f32.gmra.mrb[0].mxu0 %v535
        %v715 = vpop.f32.mrb[0].mxu0
        %v716 = vadd.f32 0.0, %v715
        %v717 = vpop.f32.mrb[0].mxu0
        %v718 = vadd.f32 0.0, %v717
        %719 = vmatprep.mubr.f32.mxu0 0.0
        %720 = vmatmul.mubr.f32.gmra.mrb[0].mxu0 %v538
        %v721 = vpop.f32.mrb[0].mxu0
        %v722 = vadd.f32 0.0, %v721
        %v723 = vpop.f32.mrb[0].mxu0
        %v724 = vadd.f32 0.0, %v723
        %725 = vdwg.mxu0
        %v726 = vadd.f32 %v615, %v621
        %v727 = vadd.f32 %v726, %v627
        %v728 = vadd.f32 %v727, %v633
        %v729 = vrot.slane %v728, 4
        %v730 = vadd.f32 %v728, %v729
        %v731 = vrot.slane %v730, 2
        %v732 = vadd.f32 %v730, %v731
        %v733 = vrot.slane %v732, 1
        %v734 = vadd.f32 %v732, %v733
        %v735 = vadd.f32 %v617, %v623
        %v736 = vadd.f32 %v735, %v629
        %v737 = vadd.f32 %v736, %v635
        %v738 = vrot.slane %v737, 4
        %v739 = vadd.f32 %v737, %v738
        %v740 = vrot.slane %v739, 2
        %v741 = vadd.f32 %v739, %v740
        %v742 = vrot.slane %v741, 1
        %v743 = vadd.f32 %v741, %v742
        %v744 = vadd.f32 %v704, %v710
        %v745 = vadd.f32 %v744, %v716
        %v746 = vadd.f32 %v745, %v722
        %v747 = vrot.slane %v746, 4
        %v748 = vadd.f32 %v746, %v747
        %v749 = vrot.slane %v748, 2
        %v750 = vadd.f32 %v748, %v749
        %v751 = vrot.slane %v750, 1
        %v752 = vadd.f32 %v750, %v751
        %v753 = vadd.f32 %v706, %v712
        %v754 = vadd.f32 %v753, %v718
        %v755 = vadd.f32 %v754, %v724
        %v756 = vrot.slane %v755, 4
        %v757 = vadd.f32 %v755, %v756
        %v758 = vrot.slane %v757, 2
        %v759 = vadd.f32 %v757, %v758
        %v760 = vrot.slane %v759, 1
        %v761 = vadd.f32 %v759, %v760
        %v762 = vrcp.pop 32.0
        %v763 = vmul.f32 %v734, %v762
        %v764 = vmul.f32 %v743, %v762
        %v765 = vmul.f32 %v752, %v762
        %v766 = vmul.f32 %v761, %v762
        %v767 = vsub.f32 %v615, %v763
        %v768 = vsub.f32 %v617, %v764
        %v769 = vsub.f32 %v704, %v765
        %v770 = vsub.f32 %v706, %v766
        %v771 = vsub.f32 %v621, %v763
        %v772 = vsub.f32 %v623, %v764
        %v773 = vsub.f32 %v710, %v765
        %v774 = vsub.f32 %v712, %v766
        %v775 = vsub.f32 %v627, %v763
        %v776 = vsub.f32 %v629, %v764
        %v777 = vsub.f32 %v716, %v765
        %v778 = vsub.f32 %v718, %v766
        %v779 = vsub.f32 %v633, %v763
        %v780 = vsub.f32 %v635, %v764
        %v781 = vsub.f32 %v722, %v765
        %v782 = vsub.f32 %v724, %v766
        %v783 = vmul.f32 %v767, %v767
        %v784 = vmul.f32 %v768, %v768
        %v785 = vmul.f32 %v769, %v769
        %v786 = vmul.f32 %v770, %v770
        %v787 = vmul.f32 %v771, %v771
        %v788 = vmul.f32 %v772, %v772
        %v789 = vmul.f32 %v773, %v773
        %v790 = vmul.f32 %v774, %v774
        %v791 = vmul.f32 %v775, %v775
        %v792 = vmul.f32 %v776, %v776
        %v793 = vmul.f32 %v777, %v777
        %v794 = vmul.f32 %v778, %v778
        %v795 = vmul.f32 %v779, %v779
        %v796 = vmul.f32 %v780, %v780
        %v797 = vmul.f32 %v781, %v781
        %v798 = vmul.f32 %v782, %v782
        %v799 = vadd.f32 %v783, %v787
        %v800 = vadd.f32 %v799, %v791
        %v801 = vadd.f32 %v800, %v795
        %v802 = vrot.slane %v801, 4
        %v803 = vadd.f32 %v801, %v802
        %v804 = vrot.slane %v803, 2
        %v805 = vadd.f32 %v803, %v804
        %v806 = vrot.slane %v805, 1
        %v807 = vadd.f32 %v805, %v806
        %v808 = vadd.f32 %v784, %v788
        %v809 = vadd.f32 %v808, %v792
        %v810 = vadd.f32 %v809, %v796
        %v811 = vrot.slane %v810, 4
        %v812 = vadd.f32 %v810, %v811
        %v813 = vrot.slane %v812, 2
        %v814 = vadd.f32 %v812, %v813
        %v815 = vrot.slane %v814, 1
        %v816 = vadd.f32 %v814, %v815
        %v817 = vadd.f32 %v785, %v789
        %v818 = vadd.f32 %v817, %v793
        %v819 = vadd.f32 %v818, %v797
        %v820 = vrot.slane %v819, 4
        %v821 = vadd.f32 %v819, %v820
        %v822 = vrot.slane %v821, 2
        %v823 = vadd.f32 %v821, %v822
        %v824 = vrot.slane %v823, 1
        %v825 = vadd.f32 %v823, %v824
        %v826 = vadd.f32 %v786, %v790
        %v827 = vadd.f32 %v826, %v794
        %v828 = vadd.f32 %v827, %v798
        %v829 = vrot.slane %v828, 4
        %v830 = vadd.f32 %v828, %v829
        %v831 = vrot.slane %v830, 2
        %v832 = vadd.f32 %v830, %v831
        %v833 = vrot.slane %v832, 1
        %v834 = vadd.f32 %v832, %v833
        %v835 = vmul.f32 %v807, %v762
        %v836 = vmul.f32 %v816, %v762
        %v837 = vmul.f32 %v825, %v762
        %v838 = vmul.f32 %v834, %v762
        %v839 = vadd.f32 %v835, 1e-05
        %v840 = vadd.f32 %v836, 1e-05
        %v841 = vadd.f32 %v837, 1e-05
        %v842 = vadd.f32 %v838, 1e-05
        %v843 = vrsqrt.pop %v839
        %v844 = vrsqrt.pop %v840
        %v845 = vrsqrt.pop %v841
        %v846 = vrsqrt.pop %v842
        %v847 = vmul.f32 %v767, %v843
        %v848 = vmul.f32 %v768, %v844
        %v849 = vmul.f32 %v769, %v845
        %v850 = vmul.f32 %v770, %v846
        %v851 = vmul.f32 %v771, %v843
        %v852 = vmul.f32 %v772, %v844
        %v853 = vmul.f32 %v773, %v845
        %v854 = vmul.f32 %v774, %v846
        %v855 = vmul.f32 %v775, %v843
        %v856 = vmul.f32 %v776, %v844
        %v857 = vmul.f32 %v777, %v845
        %v858 = vmul.f32 %v778, %v846
        %v859 = vmul.f32 %v779, %v843
        %v860 = vmul.f32 %v780, %v844
        %v861 = vmul.f32 %v781, %v845
        %v862 = vmul.f32 %v782, %v846
        %v863 = vld [vmem:[%s2] sm:$0xff]
        %v864 = vld [vmem:[%s2 + $0x8] sm:$0xff]
        %v865 = vld [vmem:[%s2 + $0x10] sm:$0xff]
        %v866 = vld [vmem:[%s2 + $0x18] sm:$0xff]
        %868 = vset.pattern.permute.xlu0 0
        %869 = vperm.xlu0 %868, %v863
        %v870 = vpop.permute.xlu0 %869
        %873 = vset.pattern.permute.xlu0 0
        %874 = vperm.xlu0 %873, %v864
        %v875 = vpop.permute.xlu0 %874
        %878 = vset.pattern.permute.xlu0 0
        %879 = vperm.xlu0 %878, %v865
        %v880 = vpop.permute.xlu0 %879
        %883 = vset.pattern.permute.xlu0 0
        %884 = vperm.xlu0 %883, %v866
        %v885 = vpop.permute.xlu0 %884
        %v887 = vmul.f32 %v847, %v870
        %v888 = vmul.f32 %v848, %v870
        %v889 = vmul.f32 %v849, %v870
        %v890 = vmul.f32 %v850, %v870
        %v891 = vmul.f32 %v851, %v875
        %v892 = vmul.f32 %v852, %v875
        %v893 = vmul.f32 %v853, %v875
        %v894 = vmul.f32 %v854, %v875
        %v895 = vmul.f32 %v855, %v880
        %v896 = vmul.f32 %v856, %v880
        %v897 = vmul.f32 %v857, %v880
        %v898 = vmul.f32 %v858, %v880
        %v899 = vmul.f32 %v859, %v885
        %v900 = vmul.f32 %v860, %v885
        %v901 = vmul.f32 %v861, %v885
        %v902 = vmul.f32 %v862, %v885
        %v903 = vld [vmem:[%s3] sm:$0xff]
        %v904 = vld [vmem:[%s3 + $0x8] sm:$0xff]
        %v905 = vld [vmem:[%s3 + $0x10] sm:$0xff]
        %v906 = vld [vmem:[%s3 + $0x18] sm:$0xff]
        %908 = vset.pattern.permute.xlu0 0
        %909 = vperm.xlu0 %908, %v903
        %v910 = vpop.permute.xlu0 %909
        %913 = vset.pattern.permute.xlu0 0
        %914 = vperm.xlu0 %913, %v904
        %v915 = vpop.permute.xlu0 %914
        %918 = vset.pattern.permute.xlu0 0
        %919 = vperm.xlu0 %918, %v905
        %v920 = vpop.permute.xlu0 %919
        %923 = vset.pattern.permute.xlu0 0
        %924 = vperm.xlu0 %923, %v906
        %v925 = vpop.permute.xlu0 %924
        %v927 = vadd.f32 %v887, %v910
        %v928 = vadd.f32 %v888, %v910
        %v929 = vadd.f32 %v889, %v910
        %v930 = vadd.f32 %v890, %v910
        %v931 = vadd.f32 %v891, %v915
        %v932 = vadd.f32 %v892, %v915
        %v933 = vadd.f32 %v893, %v915
        %v934 = vadd.f32 %v894, %v915
        %v935 = vadd.f32 %v895, %v920
        %v936 = vadd.f32 %v896, %v920
        %v937 = vadd.f32 %v897, %v920
        %v938 = vadd.f32 %v898, %v920
        %v939 = vadd.f32 %v899, %v925
        %v940 = vadd.f32 %v900, %v925
        %v941 = vadd.f32 %v901, %v925
        %v942 = vadd.f32 %v902, %v925
        %v943 = vmul.f32 %v927, %v927
        %v944 = vmul.f32 %v928, %v928
        %v945 = vmul.f32 %v929, %v929
        %v946 = vmul.f32 %v930, %v930
        %v947 = vmul.f32 %v931, %v931
        %v948 = vmul.f32 %v932, %v932
        %v949 = vmul.f32 %v933, %v933
        %v950 = vmul.f32 %v934, %v934
        %v951 = vmul.f32 %v935, %v935
        %v952 = vmul.f32 %v936, %v936
        %v953 = vmul.f32 %v937, %v937
        %v954 = vmul.f32 %v938, %v938
        %v955 = vmul.f32 %v939, %v939
        %v956 = vmul.f32 %v940, %v940
        %v957 = vmul.f32 %v941, %v941
        %v958 = vmul.f32 %v942, %v942
        %v959 = vld [vmem:[%s4] sm:$0xff]
        %v960 = vld [vmem:[%s4 + $0x8] sm:$0xff]
        %v961 = vld [vmem:[%s4 + $0x10] sm:$0xff]
        %v962 = vld [vmem:[%s4 + $0x18] sm:$0xff]
        %v963 = vld [vmem:[%s5] sm:$0xff]
        %v964 = vld [vmem:[%s5 + $0x8] sm:$0xff]
        %v965 = vld [vmem:[%s5 + $0x10] sm:$0xff]
        %v966 = vld [vmem:[%s5 + $0x18] sm:$0xff]
        %968 = vset.pattern.permute.xlu0 0
        %969 = vperm.xlu0 %968, %v963
        %v970 = vpop.permute.xlu0 %969
        %973 = vset.pattern.permute.xlu0 0
        %974 = vperm.xlu0 %973, %v964
        %v975 = vpop.permute.xlu0 %974
        %978 = vset.pattern.permute.xlu0 0
        %979 = vperm.xlu0 %978, %v965
        %v980 = vpop.permute.xlu0 %979
        %983 = vset.pattern.permute.xlu0 0
        %984 = vperm.xlu0 %983, %v966
        %v985 = vpop.permute.xlu0 %984
        %vm987 = vcmask 261120
        %v989 = vsel %vm987, %v959, 0
        %v992 = vsel %vm987, %v960, 0
        %v995 = vsel %vm987, %v961, 0
        %v998 = vsel %vm987, %v962, 0
        %1000 = vmatprep.subr.mxu0 %v944
        %1001 = vmatpush1.msra.mxu0 %v943
        %1002 = vmatprep.subr.mxu0 %v948
        %1003 = vmatpush1.msra.mxu0 %v947
        %1004 = vmatprep.subr.mxu0 %v952
        %1005 = vmatpush1.msra.mxu0 %v951
        %1006 = vmatprep.subr.mxu0 %v956
        %1007 = vmatpush1.msra.mxu0 %v955
        %1008 = vmatprep.subr.mxu0 0.0
        %1009 = vmatpush1.msra.mxu0 0.0
        %1010 = vmatprep.subr.mxu0 0.0
        %1011 = vmatpush1.msra.mxu0 0.0
        %1012 = vmatprep.subr.mxu0 0.0
        %1013 = vmatpush1.msra.mxu0 0.0
        %1014 = vmatprep.subr.mxu0 0.0
        %1015 = vmatpush1.msra.mxu0 0.0
        %1016 = vmatprep.subr.mxu0 0.0
        %1017 = vmatpush1.msra.mxu0 0.0
        %1018 = vmatprep.subr.mxu0 0.0
        %1019 = vmatpush1.msra.mxu0 0.0
        %1020 = vmatprep.subr.mxu0 0.0
        %1021 = vmatpush1.msra.mxu0 0.0
        %1022 = vmatprep.subr.mxu0 0.0
        %1023 = vmatpush1.msra.mxu0 0.0
        %1024 = vmatprep.subr.mxu0 0.0
        %1025 = vmatpush1.msra.mxu0 0.0
        %1026 = vmatprep.subr.mxu0 0.0
        %1027 = vmatpush1.msra.mxu0 0.0
        %1028 = vmatprep.subr.mxu0 0.0
        %1029 = vmatpush1.msra.mxu0 0.0
        %1030 = vmatprep.subr.mxu0 0.0
        %1031 = vmatpush1.msra.mxu0 0.0
        %1032 = vmatprep.subr.mxu0 0.0
        %1033 = vmatpush1.msra.mxu0 0.0
        %1034 = vmatprep.subr.mxu0 0.0
        %1035 = vmatpush1.msra.mxu0 0.0
        %1036 = vmatprep.subr.mxu0 0.0
        %1037 = vmatpush1.msra.mxu0 0.0
        %1038 = vmatprep.subr.mxu0 0.0
        %1039 = vmatpush1.msra.mxu0 0.0
        %1040 = vmatprep.subr.mxu0 0.0
        %1041 = vmatpush1.msra.mxu0 0.0
        %1042 = vmatprep.subr.mxu0 0.0
        %1043 = vmatpush1.msra.mxu0 0.0
        %1044 = vmatprep.subr.mxu0 0.0
        %1045 = vmatpush1.msra.mxu0 0.0
        %1046 = vmatprep.subr.mxu0 0.0
        %1047 = vmatpush1.msra.mxu0 0.0
        %1048 = vmatprep.subr.mxu0 0.0
        %1049 = vmatpush1.msra.mxu0 0.0
        %1050 = vmatprep.subr.mxu0 0.0
        %1051 = vmatpush1.msra.mxu0 0.0
        %1052 = vmatprep.subr.mxu0 0.0
        %1053 = vmatpush1.msra.mxu0 0.0
        %1054 = vmatprep.subr.mxu0 0.0
        %1055 = vmatpush1.msra.mxu0 0.0
        %1056 = vmatprep.subr.mxu0 0.0
        %1057 = vmatpush1.msra.mxu0 0.0
        %1058 = vmatprep.subr.mxu0 0.0
        %1059 = vmatpush1.msra.mxu0 0.0
        %1060 = vmatprep.subr.mxu0 0.0
        %1061 = vmatpush1.msra.mxu0 0.0
        %1062 = vmatprep.subr.mxu0 0.0
        %1063 = vmatpush1.msra.mxu0 0.0
        %1064 = vmatprep.mubr.f32.mxu0 0.0
        %1065 = vmatmul.mubr.f32.gmra.mrb[0].mxu0 %v989
        %v1066 = vpop.f32.mrb[0].mxu0
        %v1067 = vadd.f32 %v970, %v1066
        %v1068 = vpop.f32.mrb[0].mxu0
        %v1069 = vadd.f32 %v970, %v1068
        %1070 = vmatprep.mubr.f32.mxu0 0.0
        %1071 = vmatmul.mubr.f32.gmra.mrb[0].mxu0 %v992
        %v1072 = vpop.f32.mrb[0].mxu0
        %v1073 = vadd.f32 %v975, %v1072
        %v1074 = vpop.f32.mrb[0].mxu0
        %v1075 = vadd.f32 %v975, %v1074
        %1076 = vmatprep.mubr.f32.mxu0 0.0
        %1077 = vmatmul.mubr.f32.gmra.mrb[0].mxu0 %v995
        %v1078 = vpop.f32.mrb[0].mxu0
        %v1079 = vadd.f32 %v980, %v1078
        %v1080 = vpop.f32.mrb[0].mxu0
        %v1081 = vadd.f32 %v980, %v1080
        %1082 = vmatprep.mubr.f32.mxu0 0.0
        %1083 = vmatmul.mubr.f32.gmra.mrb[0].mxu0 %v998
        %v1084 = vpop.f32.mrb[0].mxu0
        %v1085 = vadd.f32 %v985, %v1084
        %v1086 = vpop.f32.mrb[0].mxu0
        %v1087 = vadd.f32 %v985, %v1086
        %1088 = vdwg.mxu0
        %1089 = vmatprep.subr.mxu0 %v946
        %1090 = vmatpush1.msra.mxu0 %v945
        %1091 = vmatprep.subr.mxu0 %v950
        %1092 = vmatpush1.msra.mxu0 %v949
        %1093 = vmatprep.subr.mxu0 %v954
        %1094 = vmatpush1.msra.mxu0 %v953
        %1095 = vmatprep.subr.mxu0 %v958
        %1096 = vmatpush1.msra.mxu0 %v957
        %1097 = vmatprep.subr.mxu0 0.0
        %1098 = vmatpush1.msra.mxu0 0.0
        %1099 = vmatprep.subr.mxu0 0.0
        %1100 = vmatpush1.msra.mxu0 0.0
        %1101 = vmatprep.subr.mxu0 0.0
        %1102 = vmatpush1.msra.mxu0 0.0
        %1103 = vmatprep.subr.mxu0 0.0
        %1104 = vmatpush1.msra.mxu0 0.0
        %1105 = vmatprep.subr.mxu0 0.0
        %1106 = vmatpush1.msra.mxu0 0.0
        %1107 = vmatprep.subr.mxu0 0.0
        %1108 = vmatpush1.msra.mxu0 0.0
        %1109 = vmatprep.subr.mxu0 0.0
        %1110 = vmatpush1.msra.mxu0 0.0
        %1111 = vmatprep.subr.mxu0 0.0
        %1112 = vmatpush1.msra.mxu0 0.0
        %1113 = vmatprep.subr.mxu0 0.0
        %1114 = vmatpush1.msra.mxu0 0.0
        %1115 = vmatprep.subr.mxu0 0.0
        %1116 = vmatpush1.msra.mxu0 0.0
        %1117 = vmatprep.subr.mxu0 0.0
        %1118 = vmatpush1.msra.mxu0 0.0
        %1119 = vmatprep.subr.mxu0 0.0
        %1120 = vmatpush1.msra.mxu0 0.0
        %1121 = vmatprep.subr.mxu0 0.0
        %1122 = vmatpush1.msra.mxu0 0.0
        %1123 = vmatprep.subr.mxu0 0.0
        %1124 = vmatpush1.msra.mxu0 0.0
        %1125 = vmatprep.subr.mxu0 0.0
        %1126 = vmatpush1.msra.mxu0 0.0
        %1127 = vmatprep.subr.mxu0 0.0
        %1128 = vmatpush1.msra.mxu0 0.0
        %1129 = vmatprep.subr.mxu0 0.0
        %1130 = vmatpush1.msra.mxu0 0.0
        %1131 = vmatprep.subr.mxu0 0.0
        %1132 = vmatpush1.msra.mxu0 0.0
        %1133 = vmatprep.subr.mxu0 0.0
        %1134 = vmatpush1.msra.mxu0 0.0
        %1135 = vmatprep.subr.mxu0 0.0
        %1136 = vmatpush1.msra.mxu0 0.0
        %1137 = vmatprep.subr.mxu0 0.0
        %1138 = vmatpush1.msra.mxu0 0.0
        %1139 = vmatprep.subr.mxu0 0.0
        %1140 = vmatpush1.msra.mxu0 0.0
        %1141 = vmatprep.subr.mxu0 0.0
        %1142 = vmatpush1.msra.mxu0 0.0
        %1143 = vmatprep.subr.mxu0 0.0
        %1144 = vmatpush1.msra.mxu0 0.0
        %1145 = vmatprep.subr.mxu0 0.0
        %1146 = vmatpush1.msra.mxu0 0.0
        %1147 = vmatprep.subr.mxu0 0.0
        %1148 = vmatpush1.msra.mxu0 0.0
        %1149 = vmatprep.subr.mxu0 0.0
        %1150 = vmatpush1.msra.mxu0 0.0
        %1151 = vmatprep.subr.mxu0 0.0
        %1152 = vmatpush1.msra.mxu0 0.0
        %1153 = vmatprep.mubr.f32.mxu0 0.0
        %1154 = vmatmul.mubr.f32.gmra.mrb[0].mxu0 %v989
        %v1155 = vpop.f32.mrb[0].mxu0
        %v1156 = vadd.f32 %v970, %v1155
        %v1157 = vpop.f32.mrb[0].mxu0
        %v1158 = vadd.f32 %v970, %v1157
        %1159 = vmatprep.mubr.f32.mxu0 0.0
        %1160 = vmatmul.mubr.f32.gmra.mrb[0].mxu0 %v992
        %v1161 = vpop.f32.mrb[0].mxu0
        %v1162 = vadd.f32 %v975, %v1161
        %v1163 = vpop.f32.mrb[0].mxu0
        %v1164 = vadd.f32 %v975, %v1163
        %1165 = vmatprep.mubr.f32.mxu0 0.0
        %1166 = vmatmul.mubr.f32.gmra.mrb[0].mxu0 %v995
        %v1167 = vpop.f32.mrb[0].mxu0
        %v1168 = vadd.f32 %v980, %v1167
        %v1169 = vpop.f32.mrb[0].mxu0
        %v1170 = vadd.f32 %v980, %v1169
        %1171 = vmatprep.mubr.f32.mxu0 0.0
        %1172 = vmatmul.mubr.f32.gmra.mrb[0].mxu0 %v998
        %v1173 = vpop.f32.mrb[0].mxu0
        %v1174 = vadd.f32 %v985, %v1173
        %v1175 = vpop.f32.mrb[0].mxu0
        %v1176 = vadd.f32 %v985, %v1175
        %1177 = vdwg.mxu0
        %v1178 = vmax.f32 %v1067, 0.0
        %v1179 = vmax.f32 %v1069, 0.0
        %v1180 = vmax.f32 %v1156, 0.0
        %v1181 = vmax.f32 %v1158, 0.0
        %v1182 = vmax.f32 %v1073, 0.0
        %v1183 = vmax.f32 %v1075, 0.0
        %v1184 = vmax.f32 %v1162, 0.0
        %v1185 = vmax.f32 %v1164, 0.0
        %v1186 = vmax.f32 %v1079, 0.0
        %v1187 = vmax.f32 %v1081, 0.0
        %v1188 = vmax.f32 %v1168, 0.0
        %v1189 = vmax.f32 %v1170, 0.0
        %v1190 = vmax.f32 %v1085, 0.0
        %v1191 = vmax.f32 %v1087, 0.0
        %v1192 = vmax.f32 %v1174, 0.0
        %v1193 = vmax.f32 %v1176, 0.0
        %v1194 = vmul.f32 %v927, %v1178
        %v1195 = vmul.f32 %v928, %v1179
        %v1196 = vmul.f32 %v929, %v1180
        %v1197 = vmul.f32 %v930, %v1181
        %v1198 = vmul.f32 %v931, %v1182
        %v1199 = vmul.f32 %v932, %v1183
        %v1200 = vmul.f32 %v933, %v1184
        %v1201 = vmul.f32 %v934, %v1185
        %v1202 = vmul.f32 %v935, %v1186
        %v1203 = vmul.f32 %v936, %v1187
        %v1204 = vmul.f32 %v937, %v1188
        %v1205 = vmul.f32 %v938, %v1189
        %v1206 = vmul.f32 %v939, %v1190
        %v1207 = vmul.f32 %v940, %v1191
        %v1208 = vmul.f32 %v941, %v1192
        %v1209 = vmul.f32 %v942, %v1193
        %s1210 = scalar_lea.vmem %s4, 32
        %v1211 = vld [vmem:[%s1210] sm:$0xff]
        %v1212 = vld [vmem:[%s1210 + $0x8] sm:$0xff]
        %v1213 = vld [vmem:[%s1210 + $0x10] sm:$0xff]
        %v1214 = vld [vmem:[%s1210 + $0x18] sm:$0xff]
        %s1215 = scalar_lea.vmem %s5, 32
        %v1216 = vld [vmem:[%s1215] sm:$0xff]
        %v1217 = vld [vmem:[%s1215 + $0x8] sm:$0xff]
        %v1218 = vld [vmem:[%s1215 + $0x10] sm:$0xff]
        %v1219 = vld [vmem:[%s1215 + $0x18] sm:$0xff]
        %1221 = vset.pattern.permute.xlu0 0
        %1222 = vperm.xlu0 %1221, %v1216
        %v1223 = vpop.permute.xlu0 %1222
        %1226 = vset.pattern.permute.xlu0 0
        %1227 = vperm.xlu0 %1226, %v1217
        %v1228 = vpop.permute.xlu0 %1227
        %1231 = vset.pattern.permute.xlu0 0
        %1232 = vperm.xlu0 %1231, %v1218
        %v1233 = vpop.permute.xlu0 %1232
        %1236 = vset.pattern.permute.xlu0 0
        %1237 = vperm.xlu0 %1236, %v1219
        %v1238 = vpop.permute.xlu0 %1237
        %v1241 = vsel %vm987, %v1211, 0
        %v1244 = vsel %vm987, %v1212, 0
        %v1247 = vsel %vm987, %v1213, 0
        %v1250 = vsel %vm987, %v1214, 0
        %1252 = vmatprep.subr.mxu0 %v1195
        %1253 = vmatpush1.msra.mxu0 %v1194
        %1254 = vmatprep.subr.mxu0 %v1199
        %1255 = vmatpush1.msra.mxu0 %v1198
        %1256 = vmatprep.subr.mxu0 %v1203
        %1257 = vmatpush1.msra.mxu0 %v1202
        %1258 = vmatprep.subr.mxu0 %v1207
        %1259 = vmatpush1.msra.mxu0 %v1206
        %1260 = vmatprep.subr.mxu0 0.0
        %1261 = vmatpush1.msra.mxu0 0.0
        %1262 = vmatprep.subr.mxu0 0.0
        %1263 = vmatpush1.msra.mxu0 0.0
        %1264 = vmatprep.subr.mxu0 0.0
        %1265 = vmatpush1.msra.mxu0 0.0
        %1266 = vmatprep.subr.mxu0 0.0
        %1267 = vmatpush1.msra.mxu0 0.0
        %1268 = vmatprep.subr.mxu0 0.0
        %1269 = vmatpush1.msra.mxu0 0.0
        %1270 = vmatprep.subr.mxu0 0.0
        %1271 = vmatpush1.msra.mxu0 0.0
        %1272 = vmatprep.subr.mxu0 0.0
        %1273 = vmatpush1.msra.mxu0 0.0
        %1274 = vmatprep.subr.mxu0 0.0
        %1275 = vmatpush1.msra.mxu0 0.0
        %1276 = vmatprep.subr.mxu0 0.0
        %1277 = vmatpush1.msra.mxu0 0.0
        %1278 = vmatprep.subr.mxu0 0.0
        %1279 = vmatpush1.msra.mxu0 0.0
        %1280 = vmatprep.subr.mxu0 0.0
        %1281 = vmatpush1.msra.mxu0 0.0
        %1282 = vmatprep.subr.mxu0 0.0
        %1283 = vmatpush1.msra.mxu0 0.0
        %1284 = vmatprep.subr.mxu0 0.0
        %1285 = vmatpush1.msra.mxu0 0.0
        %1286 = vmatprep.subr.mxu0 0.0
        %1287 = vmatpush1.msra.mxu0 0.0
        %1288 = vmatprep.subr.mxu0 0.0
        %1289 = vmatpush1.msra.mxu0 0.0
        %1290 = vmatprep.subr.mxu0 0.0
        %1291 = vmatpush1.msra.mxu0 0.0
        %1292 = vmatprep.subr.mxu0 0.0
        %1293 = vmatpush1.msra.mxu0 0.0
        %1294 = vmatprep.subr.mxu0 0.0
        %1295 = vmatpush1.msra.mxu0 0.0
        %1296 = vmatprep.subr.mxu0 0.0
        %1297 = vmatpush1.msra.mxu0 0.0
        %1298 = vmatprep.subr.mxu0 0.0
        %1299 = vmatpush1.msra.mxu0 0.0
        %1300 = vmatprep.subr.mxu0 0.0
        %1301 = vmatpush1.msra.mxu0 0.0
        %1302 = vmatprep.subr.mxu0 0.0
        %1303 = vmatpush1.msra.mxu0 0.0
        %1304 = vmatprep.subr.mxu0 0.0
        %1305 = vmatpush1.msra.mxu0 0.0
        %1306 = vmatprep.subr.mxu0 0.0
        %1307 = vmatpush1.msra.mxu0 0.0
        %1308 = vmatprep.subr.mxu0 0.0
        %1309 = vmatpush1.msra.mxu0 0.0
        %1310 = vmatprep.subr.mxu0 0.0
        %1311 = vmatpush1.msra.mxu0 0.0
        %1312 = vmatprep.subr.mxu0 0.0
        %1313 = vmatpush1.msra.mxu0 0.0
        %1314 = vmatprep.subr.mxu0 0.0
        %1315 = vmatpush1.msra.mxu0 0.0
        %1316 = vmatprep.mubr.f32.mxu0 0.0
        %1317 = vmatmul.mubr.f32.gmra.mrb[0].mxu0 %v1241
        %v1318 = vpop.f32.mrb[0].mxu0
        %v1319 = vadd.f32 %v1223, %v1318
        %v1320 = vpop.f32.mrb[0].mxu0
        %v1321 = vadd.f32 %v1223, %v1320
        %1322 = vmatprep.mubr.f32.mxu0 0.0
        %1323 = vmatmul.mubr.f32.gmra.mrb[0].mxu0 %v1244
        %v1324 = vpop.f32.mrb[0].mxu0
        %v1325 = vadd.f32 %v1228, %v1324
        %v1326 = vpop.f32.mrb[0].mxu0
        %v1327 = vadd.f32 %v1228, %v1326
        %1328 = vmatprep.mubr.f32.mxu0 0.0
        %1329 = vmatmul.mubr.f32.gmra.mrb[0].mxu0 %v1247
        %v1330 = vpop.f32.mrb[0].mxu0
        %v1331 = vadd.f32 %v1233, %v1330
        %v1332 = vpop.f32.mrb[0].mxu0
        %v1333 = vadd.f32 %v1233, %v1332
        %1334 = vmatprep.mubr.f32.mxu0 0.0
        %1335 = vmatmul.mubr.f32.gmra.mrb[0].mxu0 %v1250
        %v1336 = vpop.f32.mrb[0].mxu0
        %v1337 = vadd.f32 %v1238, %v1336
        %v1338 = vpop.f32.mrb[0].mxu0
        %v1339 = vadd.f32 %v1238, %v1338
        %1340 = vdwg.mxu0
        %1341 = vmatprep.subr.mxu0 %v1197
        %1342 = vmatpush1.msra.mxu0 %v1196
        %1343 = vmatprep.subr.mxu0 %v1201
        %1344 = vmatpush1.msra.mxu0 %v1200
        %1345 = vmatprep.subr.mxu0 %v1205
        %1346 = vmatpush1.msra.mxu0 %v1204
        %1347 = vmatprep.subr.mxu0 %v1209
        %1348 = vmatpush1.msra.mxu0 %v1208
        %1349 = vmatprep.subr.mxu0 0.0
        %1350 = vmatpush1.msra.mxu0 0.0
        %1351 = vmatprep.subr.mxu0 0.0
        %1352 = vmatpush1.msra.mxu0 0.0
        %1353 = vmatprep.subr.mxu0 0.0
        %1354 = vmatpush1.msra.mxu0 0.0
        %1355 = vmatprep.subr.mxu0 0.0
        %1356 = vmatpush1.msra.mxu0 0.0
        %1357 = vmatprep.subr.mxu0 0.0
        %1358 = vmatpush1.msra.mxu0 0.0
        %1359 = vmatprep.subr.mxu0 0.0
        %1360 = vmatpush1.msra.mxu0 0.0
        %1361 = vmatprep.subr.mxu0 0.0
        %1362 = vmatpush1.msra.mxu0 0.0
        %1363 = vmatprep.subr.mxu0 0.0
        %1364 = vmatpush1.msra.mxu0 0.0
        %1365 = vmatprep.subr.mxu0 0.0
        %1366 = vmatpush1.msra.mxu0 0.0
        %1367 = vmatprep.subr.mxu0 0.0
        %1368 = vmatpush1.msra.mxu0 0.0
        %1369 = vmatprep.subr.mxu0 0.0
        %1370 = vmatpush1.msra.mxu0 0.0
        %1371 = vmatprep.subr.mxu0 0.0
        %1372 = vmatpush1.msra.mxu0 0.0
        %1373 = vmatprep.subr.mxu0 0.0
        %1374 = vmatpush1.msra.mxu0 0.0
        %1375 = vmatprep.subr.mxu0 0.0
        %1376 = vmatpush1.msra.mxu0 0.0
        %1377 = vmatprep.subr.mxu0 0.0
        %1378 = vmatpush1.msra.mxu0 0.0
        %1379 = vmatprep.subr.mxu0 0.0
        %1380 = vmatpush1.msra.mxu0 0.0
        %1381 = vmatprep.subr.mxu0 0.0
        %1382 = vmatpush1.msra.mxu0 0.0
        %1383 = vmatprep.subr.mxu0 0.0
        %1384 = vmatpush1.msra.mxu0 0.0
        %1385 = vmatprep.subr.mxu0 0.0
        %1386 = vmatpush1.msra.mxu0 0.0
        %1387 = vmatprep.subr.mxu0 0.0
        %1388 = vmatpush1.msra.mxu0 0.0
        %1389 = vmatprep.subr.mxu0 0.0
        %1390 = vmatpush1.msra.mxu0 0.0
        %1391 = vmatprep.subr.mxu0 0.0
        %1392 = vmatpush1.msra.mxu0 0.0
        %1393 = vmatprep.subr.mxu0 0.0
        %1394 = vmatpush1.msra.mxu0 0.0
        %1395 = vmatprep.subr.mxu0 0.0
        %1396 = vmatpush1.msra.mxu0 0.0
        %1397 = vmatprep.subr.mxu0 0.0
        %1398 = vmatpush1.msra.mxu0 0.0
        %1399 = vmatprep.subr.mxu0 0.0
        %1400 = vmatpush1.msra.mxu0 0.0
        %1401 = vmatprep.subr.mxu0 0.0
        %1402 = vmatpush1.msra.mxu0 0.0
        %1403 = vmatprep.subr.mxu0 0.0
        %1404 = vmatpush1.msra.mxu0 0.0
        %1405 = vmatprep.mubr.f32.mxu0 0.0
        %1406 = vmatmul.mubr.f32.gmra.mrb[0].mxu0 %v1241
        %v1407 = vpop.f32.mrb[0].mxu0
        %v1408 = vadd.f32 %v1223, %v1407
        %v1409 = vpop.f32.mrb[0].mxu0
        %v1410 = vadd.f32 %v1223, %v1409
        %1411 = vmatprep.mubr.f32.mxu0 0.0
        %1412 = vmatmul.mubr.f32.gmra.mrb[0].mxu0 %v1244
        %v1413 = vpop.f32.mrb[0].mxu0
        %v1414 = vadd.f32 %v1228, %v1413
        %v1415 = vpop.f32.mrb[0].mxu0
        %v1416 = vadd.f32 %v1228, %v1415
        %1417 = vmatprep.mubr.f32.mxu0 0.0
        %1418 = vmatmul.mubr.f32.gmra.mrb[0].mxu0 %v1247
        %v1419 = vpop.f32.mrb[0].mxu0
        %v1420 = vadd.f32 %v1233, %v1419
        %v1421 = vpop.f32.mrb[0].mxu0
        %v1422 = vadd.f32 %v1233, %v1421
        %1423 = vmatprep.mubr.f32.mxu0 0.0
        %1424 = vmatmul.mubr.f32.gmra.mrb[0].mxu0 %v1250
        %v1425 = vpop.f32.mrb[0].mxu0
        %v1426 = vadd.f32 %v1238, %v1425
        %v1427 = vpop.f32.mrb[0].mxu0
        %v1428 = vadd.f32 %v1238, %v1427
        %1429 = vdwg.mxu0
        %v1430 = vmax.f32 %v1319, 0.0
        %v1431 = vmax.f32 %v1321, 0.0
        %v1432 = vmax.f32 %v1408, 0.0
        %v1433 = vmax.f32 %v1410, 0.0
        %v1434 = vmax.f32 %v1325, 0.0
        %v1435 = vmax.f32 %v1327, 0.0
        %v1436 = vmax.f32 %v1414, 0.0
        %v1437 = vmax.f32 %v1416, 0.0
        %v1438 = vmax.f32 %v1331, 0.0
        %v1439 = vmax.f32 %v1333, 0.0
        %v1440 = vmax.f32 %v1420, 0.0
        %v1441 = vmax.f32 %v1422, 0.0
        %v1442 = vmax.f32 %v1337, 0.0
        %v1443 = vmax.f32 %v1339, 0.0
        %v1444 = vmax.f32 %v1426, 0.0
        %v1445 = vmax.f32 %v1428, 0.0
        %v1446 = vld [vmem:[%s6] sm:$0xff]
        %v1447 = vmul.f32 %v927, %v1430
        %v1448 = vmul.f32 %v928, %v1431
        %v1449 = vmul.f32 %v929, %v1432
        %v1450 = vmul.f32 %v930, %v1433
        %v1451 = vmul.f32 %v931, %v1434
        %v1452 = vmul.f32 %v932, %v1435
        %v1453 = vmul.f32 %v933, %v1436
        %v1454 = vmul.f32 %v934, %v1437
        %v1455 = vmul.f32 %v935, %v1438
        %v1456 = vmul.f32 %v936, %v1439
        %v1457 = vmul.f32 %v937, %v1440
        %v1458 = vmul.f32 %v938, %v1441
        %v1459 = vmul.f32 %v939, %v1442
        %v1460 = vmul.f32 %v940, %v1443
        %v1461 = vmul.f32 %v941, %v1444
        %v1462 = vmul.f32 %v942, %v1445
        %v1463 = vld [vmem:[%s7] sm:$0xff]
        %1465 = vset.pattern.permute.xlu0 0
        %1466 = vperm.xlu0 %1465, %v1463
        %v1467 = vpop.permute.xlu0 %1466
        %v1470 = vsel %vm987, %v1446, 0
        %1472 = vmatprep.subr.mxu0 %v1448
        %1473 = vmatpush1.msra.mxu0 %v1447
        %1474 = vmatprep.subr.mxu0 %v1452
        %1475 = vmatpush1.msra.mxu0 %v1451
        %1476 = vmatprep.subr.mxu0 %v1456
        %1477 = vmatpush1.msra.mxu0 %v1455
        %1478 = vmatprep.subr.mxu0 %v1460
        %1479 = vmatpush1.msra.mxu0 %v1459
        %1480 = vmatprep.subr.mxu0 0.0
        %1481 = vmatpush1.msra.mxu0 0.0
        %1482 = vmatprep.subr.mxu0 0.0
        %1483 = vmatpush1.msra.mxu0 0.0
        %1484 = vmatprep.subr.mxu0 0.0
        %1485 = vmatpush1.msra.mxu0 0.0
        %1486 = vmatprep.subr.mxu0 0.0
        %1487 = vmatpush1.msra.mxu0 0.0
        %1488 = vmatprep.subr.mxu0 0.0
        %1489 = vmatpush1.msra.mxu0 0.0
        %1490 = vmatprep.subr.mxu0 0.0
        %1491 = vmatpush1.msra.mxu0 0.0
        %1492 = vmatprep.subr.mxu0 0.0
        %1493 = vmatpush1.msra.mxu0 0.0
        %1494 = vmatprep.subr.mxu0 0.0
        %1495 = vmatpush1.msra.mxu0 0.0
        %1496 = vmatprep.subr.mxu0 0.0
        %1497 = vmatpush1.msra.mxu0 0.0
        %1498 = vmatprep.subr.mxu0 0.0
        %1499 = vmatpush1.msra.mxu0 0.0
        %1500 = vmatprep.subr.mxu0 0.0
        %1501 = vmatpush1.msra.mxu0 0.0
        %1502 = vmatprep.subr.mxu0 0.0
        %1503 = vmatpush1.msra.mxu0 0.0
        %1504 = vmatprep.subr.mxu0 0.0
        %1505 = vmatpush1.msra.mxu0 0.0
        %1506 = vmatprep.subr.mxu0 0.0
        %1507 = vmatpush1.msra.mxu0 0.0
        %1508 = vmatprep.subr.mxu0 0.0
        %1509 = vmatpush1.msra.mxu0 0.0
        %1510 = vmatprep.subr.mxu0 0.0
        %1511 = vmatpush1.msra.mxu0 0.0
        %1512 = vmatprep.subr.mxu0 0.0
        %1513 = vmatpush1.msra.mxu0 0.0
        %1514 = vmatprep.subr.mxu0 0.0
        %1515 = vmatpush1.msra.mxu0 0.0
        %1516 = vmatprep.subr.mxu0 0.0
        %1517 = vmatpush1.msra.mxu0 0.0
        %1518 = vmatprep.subr.mxu0 0.0
        %1519 = vmatpush1.msra.mxu0 0.0
        %1520 = vmatprep.subr.mxu0 0.0
        %1521 = vmatpush1.msra.mxu0 0.0
        %1522 = vmatprep.subr.mxu0 0.0
        %1523 = vmatpush1.msra.mxu0 0.0
        %1524 = vmatprep.subr.mxu0 0.0
        %1525 = vmatpush1.msra.mxu0 0.0
        %1526 = vmatprep.subr.mxu0 0.0
        %1527 = vmatpush1.msra.mxu0 0.0
        %1528 = vmatprep.subr.mxu0 0.0
        %1529 = vmatpush1.msra.mxu0 0.0
        %1530 = vmatprep.subr.mxu0 0.0
        %1531 = vmatpush1.msra.mxu0 0.0
        %1532 = vmatprep.subr.mxu0 0.0
        %1533 = vmatpush1.msra.mxu0 0.0
        %1534 = vmatprep.subr.mxu0 0.0
        %1535 = vmatpush1.msra.mxu0 0.0
        %1536 = vmatprep.mubr.f32.mxu0 0.0
        %1537 = vmatmul.mubr.f32.gmra.mrb[0].mxu0 %v1470
        %v1538 = vpop.f32.mrb[0].mxu0
        %v1539 = vadd.f32 %v1467, %v1538
        %v1540 = vpop.f32.mrb[0].mxu0
        %v1541 = vadd.f32 %v1467, %v1540
        %1542 = vdwg.mxu0
        %1543 = vmatprep.subr.mxu0 %v1450
        %1544 = vmatpush1.msra.mxu0 %v1449
        %1545 = vmatprep.subr.mxu0 %v1454
        %1546 = vmatpush1.msra.mxu0 %v1453
        %1547 = vmatprep.subr.mxu0 %v1458
        %1548 = vmatpush1.msra.mxu0 %v1457
        %1549 = vmatprep.subr.mxu0 %v1462
        %1550 = vmatpush1.msra.mxu0 %v1461
        %1551 = vmatprep.subr.mxu0 0.0
        %1552 = vmatpush1.msra.mxu0 0.0
        %1553 = vmatprep.subr.mxu0 0.0
        %1554 = vmatpush1.msra.mxu0 0.0
        %1555 = vmatprep.subr.mxu0 0.0
        %1556 = vmatpush1.msra.mxu0 0.0
        %1557 = vmatprep.subr.mxu0 0.0
        %1558 = vmatpush1.msra.mxu0 0.0
        %1559 = vmatprep.subr.mxu0 0.0
        %1560 = vmatpush1.msra.mxu0 0.0
        %1561 = vmatprep.subr.mxu0 0.0
        %1562 = vmatpush1.msra.mxu0 0.0
        %1563 = vmatprep.subr.mxu0 0.0
        %1564 = vmatpush1.msra.mxu0 0.0
        %1565 = vmatprep.subr.mxu0 0.0
        %1566 = vmatpush1.msra.mxu0 0.0
        %1567 = vmatprep.subr.mxu0 0.0
        %1568 = vmatpush1.msra.mxu0 0.0
        %1569 = vmatprep.subr.mxu0 0.0
        %1570 = vmatpush1.msra.mxu0 0.0
        %1571 = vmatprep.subr.mxu0 0.0
        %1572 = vmatpush1.msra.mxu0 0.0
        %1573 = vmatprep.subr.mxu0 0.0
        %1574 = vmatpush1.msra.mxu0 0.0
        %1575 = vmatprep.subr.mxu0 0.0
        %1576 = vmatpush1.msra.mxu0 0.0
        %1577 = vmatprep.subr.mxu0 0.0
        %1578 = vmatpush1.msra.mxu0 0.0
        %1579 = vmatprep.subr.mxu0 0.0
        %1580 = vmatpush1.msra.mxu0 0.0
        %1581 = vmatprep.subr.mxu0 0.0
        %1582 = vmatpush1.msra.mxu0 0.0
        %1583 = vmatprep.subr.mxu0 0.0
        %1584 = vmatpush1.msra.mxu0 0.0
        %1585 = vmatprep.subr.mxu0 0.0
        %1586 = vmatpush1.msra.mxu0 0.0
        %1587 = vmatprep.subr.mxu0 0.0
        %1588 = vmatpush1.msra.mxu0 0.0
        %1589 = vmatprep.subr.mxu0 0.0
        %1590 = vmatpush1.msra.mxu0 0.0
        %1591 = vmatprep.subr.mxu0 0.0
        %1592 = vmatpush1.msra.mxu0 0.0
        %1593 = vmatprep.subr.mxu0 0.0
        %1594 = vmatpush1.msra.mxu0 0.0
        %1595 = vmatprep.subr.mxu0 0.0
        %1596 = vmatpush1.msra.mxu0 0.0
        %1597 = vmatprep.subr.mxu0 0.0
        %1598 = vmatpush1.msra.mxu0 0.0
        %1599 = vmatprep.subr.mxu0 0.0
        %1600 = vmatpush1.msra.mxu0 0.0
        %1601 = vmatprep.subr.mxu0 0.0
        %1602 = vmatpush1.msra.mxu0 0.0
        %1603 = vmatprep.subr.mxu0 0.0
        %1604 = vmatpush1.msra.mxu0 0.0
        %1605 = vmatprep.subr.mxu0 0.0
        %1606 = vmatpush1.msra.mxu0 0.0
        %1607 = vmatprep.mubr.f32.mxu0 0.0
        %1608 = vmatmul.mubr.f32.gmra.mrb[0].mxu0 %v1470
        %v1609 = vpop.f32.mrb[0].mxu0
        %v1610 = vadd.f32 %v1467, %v1609
        %v1611 = vpop.f32.mrb[0].mxu0
        %v1612 = vadd.f32 %v1467, %v1611
        %1613 = vdwg.mxu0
        %1614 = vst [vmem:[%s299] sm:$0xff] %v1539
        %1615 = vst [vmem:[%s299 + $0x8] sm:$0xff] %v1541
        %1616 = vst [vmem:[%s299 + $0x10] sm:$0xff] %v1610
        %1617 = vst [vmem:[%s299 + $0x18] sm:$0xff] %v1612
        %s1618 = sand.u32 %s203, 1
        %s1619 = scalar_lea.sflag [#allocation3], %s1618
        %s1620 = sand.u32 %s203, 1
        %s1621 = smul.addr %s1620, 32
        %s1622 = scalar_lea.vmem [#allocation2], %s1621
        // Predicated region
        $region53: #{tpu_custom_call.1} parent=51 // pred_check
          %p1623 = pneg %p213
        $region54: #{tpu_custom_call.1} parent=51 // pred_check_branch
          %1625 = sbr.rel (%p1623) target = $region56
        $region55: #{tpu_custom_call.1} parent=51 // pred_region
          %s1626 = smul.u32 4, %s22
          %s1628 = ssub.s32 512, 512
          %1629 = vsyncadd %s1619, %s1628
          %s1630 = smul.addr %s1626, 128
          %s1631 = scalar_lea.hbm %s8, %s1630
          %s1633 = sshll.u32 %s1622, 4
          %s1634 = int_to_ptr.vmem [resolvable:$true] %s1633
          %1636 = dma.vmem_to_hbm [thread:$0]  %s1634, 512, %s1631, %s1619
        $region56: #{tpu_custom_call.1} parent=51 // pred_fallthru
          _
      $region52: #{tpu_custom_call.1} parent=5 // pred_fallthru
        _
      %p1637 = scmp.le.s32.totalorder 2, %s17
      // Predicated region
      $region57: #{tpu_custom_call.1} parent=5 // pred_check
        %p1638 = pneg %p1637
      $region58: #{tpu_custom_call.1} parent=5 // pred_check_branch
        %1640 = sbr.rel (%p1638) target = $region60
      $region59: #{tpu_custom_call.1} parent=5 // pred_region
        %s1641 = ssub.s32 %s17, 2
        // Predicated region
        $region61: #{tpu_custom_call.1} parent=59 // pred_check
          %p1642 = pneg %p219
        $region62: #{tpu_custom_call.1} parent=59 // pred_check_branch
          %1644 = sbr.rel (%p1642) target = $region64
        $region63: #{tpu_custom_call.1} parent=59 // pred_region
          %s1645 = sand.u32 %s204, 1
          %s1646 = scalar_lea.sflag [#allocation3], %s1645
          %s1647 = sand.u32 %s204, 1
          %s1648 = smul.addr %s1647, 32
          %s1649 = scalar_lea.vmem [#allocation2], %s1648
          %1650 = dma.done %s1646, 512
        $region64: #{tpu_custom_call.1} parent=59 // pred_fallthru
          _
      $region60: #{tpu_custom_call.1} parent=5 // pred_fallthru
        _
    $region6: #{tpu_custom_call.1} parent=1 // loop_footer
      %s21 = sadd.s32 1, %s17
    $region7: #{tpu_custom_call.1} parent=1 // loop_footer_branch
      %16 = sbr.rel target = $region3
    $region8: #{tpu_custom_call.1} parent=1 // loop_exit
      _
    %1651 = vsyncpa [#allocation3], 1
    %s1652 = scalar_lea.sflag [#allocation3], 1
    %1653 = vsyncpa %s1652, 1

</llo_original>
